<compile_context>
chip_gen: v6e
topology: v6e:2x2x1
jax: 0.10.0
libtpu: 0.0.40
codegen_flags: <defaults>
</compile_context>

<pallas_src>
import functools

import jax
import jax.numpy as jnp
from jax.experimental import pallas as pl
from jax.experimental.pallas import tpu as pltpu


def _round_up(x, m):
    return (x + m - 1) // m * m


# ------------------------------ Pallas kernel ------------------------------ #

def _conv_bias_relu_kernel(x_ref, w_ref, b_ref, o_ref, *, kh, kw, wp, mp):
    """Direct convolution via in-kernel tap accumulation (one image per grid step).

    x_ref: (Cin, Lp)          flattened, spatially padded activation of one image
    w_ref: (kh*kw, Cout, Cin) weight taps
    b_ref: (Cout, 1)          bias
    o_ref: (Cout, Mp)         channel-major output, Mp = round_up(H*Wp, 128)
    """
    acc = jnp.zeros(o_ref.shape, jnp.float32)
    for dy in range(kh):
        for dx in range(kw):
            off = dy * wp + dx                        # static flat shift of this tap
            x_tap = x_ref[:, pl.ds(off, mp)]          # (Cin, Mp) shifted view
            w_tap = w_ref[dy * kw + dx]               # (Cout, Cin)
            acc += jnp.dot(w_tap, x_tap, preferred_element_type=jnp.float32)
    acc += b_ref[...]                                 # bias once, after the tap loop
    o_ref[...] = jnp.maximum(acc, 0.0).astype(o_ref.dtype)


def conv_block(x, w, b):
    """ConvBlock forward: Conv2d(k, stride=1, padding=(k-1)//2) + bias + ReLU.

    x: (N, Cin, H, W) float32  (PyTorch NCHW layout)
    w: (Cout, Cin, kh, kw) float32  (PyTorch OIHW layout)
    b: (Cout,) float32
    returns (N, Cout, H, W) float32 (NCHW)
    """
    N, Cin, H, W = x.shape
    Cout, Cin2, kh, kw = w.shape
    assert Cin2 == Cin
    ph, pw = (kh - 1) // 2, (kw - 1) // 2
    Hp, Wp = H + 2 * ph, W + 2 * pw

    # Output columns computed per image: Mp >= H*Wp, lane-dense (multiple of 128).
    # Tap slices start at flat offsets up to (kh-1)*Wp + (kw-1), so the flat input
    # buffer needs Lp >= max_off + Mp (which is automatically >= Hp*Wp).
    Mp = _round_up(H * Wp, 128)
    max_off = (kh - 1) * Wp + (kw - 1)
    Lp = _round_up(max_off + Mp, 128)

    xp = jnp.pad(x, ((0, 0), (0, 0), (ph, ph), (pw, pw)))       # (N, Cin, Hp, Wp)
    xf = xp.reshape(N, Cin, Hp * Wp)
    xf = jnp.pad(xf, ((0, 0), (0, 0), (0, Lp - Hp * Wp)))       # (N, Cin, Lp)

    wt = jnp.transpose(w, (2, 3, 0, 1)).reshape(kh * kw, Cout, Cin)
    bias = b.reshape(Cout, 1)

    kernel = functools.partial(_conv_bias_relu_kernel, kh=kh, kw=kw, wp=Wp, mp=Mp)
    flops = 2 * N * H * W * kh * kw * Cin * Cout
    bytes_accessed = 4 * (N * Cin * Lp + kh * kw * Cout * Cin + Cout + N * Cout * Mp)

    out = pl.pallas_call(
        kernel,
        out_shape=jax.ShapeDtypeStruct((N, Cout, Mp), jnp.float32),
        grid_spec=pltpu.PrefetchScalarGridSpec(
            num_scalar_prefetch=0,
            grid=(N,),
            in_specs=[
                pl.BlockSpec((None, Cin, Lp), lambda n: (n, 0, 0)),
                pl.BlockSpec((kh * kw, Cout, Cin), lambda n: (0, 0, 0)),
                pl.BlockSpec((Cout, 1), lambda n: (0, 0)),
            ],
            out_specs=pl.BlockSpec((None, Cout, Mp), lambda n: (n, 0, 0)),
        ),
        compiler_params=pltpu.CompilerParams(
            dimension_semantics=("parallel",)),
        cost_estimate=pl.CostEstimate(
            flops=flops, transcendentals=0, bytes_accessed=bytes_accessed),
    )(xf, wt, bias)

    # (N, Cout, Mp) -> NCHW: output row h lives at flat columns [h*Wp, h*Wp + W).
    y = out[:, :, :H * Wp].reshape(N, Cout, H, Wp)[:, :, :, :W]
    return y


# --------------------------- pure-JAX reference ----------------------------- #

def conv_block_ref(x, w, b):
    kh, kw = w.shape[2], w.shape[3]
    ph, pw = (kh - 1) // 2, (kw - 1) // 2
    y = jax.lax.conv_general_dilated(
        x, w, window_strides=(1, 1), padding=((ph, ph), (pw, pw)),
        dimension_numbers=("NCHW", "OIHW", "NCHW"))
    return jnp.maximum(y + b[None, :, None, None], 0.0)


# ---------------------------------- main ------------------------------------ #

if __name__ == "__main__":
    key = jax.random.PRNGKey(0)
    kx, kwt, kb = jax.random.split(key, 3)

    # Small shapes consistent with the module: ConvBlock(in=4, out=8, k=3).
    N, Cin, H, W = 2, 4, 16, 16
    Cout, ksz = 8, 3

    x = jax.random.normal(kx, (N, Cin, H, W), jnp.float32)
    fan_in = Cin * ksz * ksz
    bound = 1.0 / float(fan_in) ** 0.5
    w = jax.random.uniform(kwt, (Cout, Cin, ksz, ksz), jnp.float32, -bound, bound)
    b = jax.random.uniform(kb, (Cout,), jnp.float32, -bound, bound)

    fwd = jax.jit(conv_block)
    y = fwd(x, w, b)
    jax.block_until_ready(y)
    assert y.shape == (N, Cout, H, W), y.shape

    y_ref = conv_block_ref(x, w, b)
    err = float(jnp.max(jnp.abs(y - y_ref)))
    assert jnp.allclose(y, y_ref, atol=1e-4, rtol=1e-4), err

    print("KERNEL_OK")
</pallas_src>

<mosaic_0001>
module attributes {stable_mosaic.version = 11 : i64} {
  func.func @_conv_bias_relu_kernel(%arg0: i32, %arg1: memref<1x4x512xf32, #tpu.memory_space<vmem>>, %arg2: memref<9x8x4xf32, #tpu.memory_space<vmem>>, %arg3: memref<8x1xf32, #tpu.memory_space<vmem>>, %arg4: memref<1x8x384xf32, #tpu.memory_space<vmem>>) attributes {dimension_semantics = [#tpu.dimension_semantics<parallel>], iteration_bounds = array<i64: 2>, scalar_prefetch = 0 : i64, scratch_operands = 0 : i64, tpu.core_type = #tpu.core_type<tc>, window_params = [{transform_indices = @transform_0, window_bounds = array<i64: 1, 4, 512>}, {pipeline_mode = #tpu.pipeline_mode<synchronous>, transform_indices = @transform_1, window_bounds = array<i64: 9, 8, 4>}, {pipeline_mode = #tpu.pipeline_mode<synchronous>, transform_indices = @transform_2, window_bounds = array<i64: 8, 1>}, {transform_indices = @transform_3, window_bounds = array<i64: 1, 8, 384>}]} {
    %cst = arith.constant 0.000000e+00 : f32
    %0 = vector.broadcast %cst : f32 to vector<8x384xf32>
    %c0 = arith.constant 0 : index
    %c0_0 = arith.constant 0 : index
    %c0_1 = arith.constant 0 : index
    %1 = vector.load %arg1[%c0, %c0_0, %c0_1] : memref<1x4x512xf32, #tpu.memory_space<vmem>>, vector<1x4x384xf32>
    %2 = vector.shape_cast %1 : vector<1x4x384xf32> to vector<4x384xf32>
    %c0_2 = arith.constant 0 : index
    %c0_3 = arith.constant 0 : index
    %c0_4 = arith.constant 0 : index
    %3 = vector.load %arg2[%c0_2, %c0_3, %c0_4] : memref<9x8x4xf32, #tpu.memory_space<vmem>>, vector<1x8x4xf32>
    %4 = vector.shape_cast %3 : vector<1x8x4xf32> to vector<8x4xf32>
    %cst_5 = arith.constant dense<0.000000e+00> : vector<8x384xf32>
    %5 = tpu.matmul %4, %2, %cst_5 {dimension_numbers = #tpu.dot_dimension_numbers<[1], [0], [0], [1], [0, 0, 1, 1], [], []>} : vector<8x4xf32>, vector<4x384xf32>, vector<8x384xf32> -> vector<8x384xf32>
    %6 = arith.addf %0, %5 : vector<8x384xf32>
    %c0_6 = arith.constant 0 : index
    %c0_7 = arith.constant 0 : index
    %c1 = arith.constant 1 : index
    %7 = vector.load %arg1[%c0_6, %c0_7, %c1] : memref<1x4x512xf32, #tpu.memory_space<vmem>>, vector<1x4x384xf32>
    %8 = vector.shape_cast %7 : vector<1x4x384xf32> to vector<4x384xf32>
    %c1_8 = arith.constant 1 : index
    %c0_9 = arith.constant 0 : index
    %c0_10 = arith.constant 0 : index
    %9 = vector.load %arg2[%c1_8, %c0_9, %c0_10] : memref<9x8x4xf32, #tpu.memory_space<vmem>>, vector<1x8x4xf32>
    %10 = vector.shape_cast %9 : vector<1x8x4xf32> to vector<8x4xf32>
    %cst_11 = arith.constant dense<0.000000e+00> : vector<8x384xf32>
    %11 = tpu.matmul %10, %8, %cst_11 {dimension_numbers = #tpu.dot_dimension_numbers<[1], [0], [0], [1], [0, 0, 1, 1], [], []>} : vector<8x4xf32>, vector<4x384xf32>, vector<8x384xf32> -> vector<8x384xf32>
    %12 = arith.addf %6, %11 : vector<8x384xf32>
    %c0_12 = arith.constant 0 : index
    %c0_13 = arith.constant 0 : index
    %c2 = arith.constant 2 : index
    %13 = vector.load %arg1[%c0_12, %c0_13, %c2] : memref<1x4x512xf32, #tpu.memory_space<vmem>>, vector<1x4x384xf32>
    %14 = vector.shape_cast %13 : vector<1x4x384xf32> to vector<4x384xf32>
    %c2_14 = arith.constant 2 : index
    %c0_15 = arith.constant 0 : index
    %c0_16 = arith.constant 0 : index
    %15 = vector.load %arg2[%c2_14, %c0_15, %c0_16] : memref<9x8x4xf32, #tpu.memory_space<vmem>>, vector<1x8x4xf32>
    %16 = vector.shape_cast %15 : vector<1x8x4xf32> to vector<8x4xf32>
    %cst_17 = arith.constant dense<0.000000e+00> : vector<8x384xf32>
    %17 = tpu.matmul %16, %14, %cst_17 {dimension_numbers = #tpu.dot_dimension_numbers<[1], [0], [0], [1], [0, 0, 1, 1], [], []>} : vector<8x4xf32>, vector<4x384xf32>, vector<8x384xf32> -> vector<8x384xf32>
    %18 = arith.addf %12, %17 : vector<8x384xf32>
    %c0_18 = arith.constant 0 : index
    %c0_19 = arith.constant 0 : index
    %c18 = arith.constant 18 : index
    %19 = vector.load %arg1[%c0_18, %c0_19, %c18] : memref<1x4x512xf32, #tpu.memory_space<vmem>>, vector<1x4x384xf32>
    %20 = vector.shape_cast %19 : vector<1x4x384xf32> to vector<4x384xf32>
    %c3 = arith.constant 3 : index
    %c0_20 = arith.constant 0 : index
    %c0_21 = arith.constant 0 : index
    %21 = vector.load %arg2[%c3, %c0_20, %c0_21] : memref<9x8x4xf32, #tpu.memory_space<vmem>>, vector<1x8x4xf32>
    %22 = vector.shape_cast %21 : vector<1x8x4xf32> to vector<8x4xf32>
    %cst_22 = arith.constant dense<0.000000e+00> : vector<8x384xf32>
    %23 = tpu.matmul %22, %20, %cst_22 {dimension_numbers = #tpu.dot_dimension_numbers<[1], [0], [0], [1], [0, 0, 1, 1], [], []>} : vector<8x4xf32>, vector<4x384xf32>, vector<8x384xf32> -> vector<8x384xf32>
    %24 = arith.addf %18, %23 : vector<8x384xf32>
    %c0_23 = arith.constant 0 : index
    %c0_24 = arith.constant 0 : index
    %c19 = arith.constant 19 : index
    %25 = vector.load %arg1[%c0_23, %c0_24, %c19] : memref<1x4x512xf32, #tpu.memory_space<vmem>>, vector<1x4x384xf32>
    %26 = vector.shape_cast %25 : vector<1x4x384xf32> to vector<4x384xf32>
    %c4 = arith.constant 4 : index
    %c0_25 = arith.constant 0 : index
    %c0_26 = arith.constant 0 : index
    %27 = vector.load %arg2[%c4, %c0_25, %c0_26] : memref<9x8x4xf32, #tpu.memory_space<vmem>>, vector<1x8x4xf32>
    %28 = vector.shape_cast %27 : vector<1x8x4xf32> to vector<8x4xf32>
    %cst_27 = arith.constant dense<0.000000e+00> : vector<8x384xf32>
    %29 = tpu.matmul %28, %26, %cst_27 {dimension_numbers = #tpu.dot_dimension_numbers<[1], [0], [0], [1], [0, 0, 1, 1], [], []>} : vector<8x4xf32>, vector<4x384xf32>, vector<8x384xf32> -> vector<8x384xf32>
    %30 = arith.addf %24, %29 : vector<8x384xf32>
    %c0_28 = arith.constant 0 : index
    %c0_29 = arith.constant 0 : index
    %c20 = arith.constant 20 : index
    %31 = vector.load %arg1[%c0_28, %c0_29, %c20] : memref<1x4x512xf32, #tpu.memory_space<vmem>>, vector<1x4x384xf32>
    %32 = vector.shape_cast %31 : vector<1x4x384xf32> to vector<4x384xf32>
    %c5 = arith.constant 5 : index
    %c0_30 = arith.constant 0 : index
    %c0_31 = arith.constant 0 : index
    %33 = vector.load %arg2[%c5, %c0_30, %c0_31] : memref<9x8x4xf32, #tpu.memory_space<vmem>>, vector<1x8x4xf32>
    %34 = vector.shape_cast %33 : vector<1x8x4xf32> to vector<8x4xf32>
    %cst_32 = arith.constant dense<0.000000e+00> : vector<8x384xf32>
    %35 = tpu.matmul %34, %32, %cst_32 {dimension_numbers = #tpu.dot_dimension_numbers<[1], [0], [0], [1], [0, 0, 1, 1], [], []>} : vector<8x4xf32>, vector<4x384xf32>, vector<8x384xf32> -> vector<8x384xf32>
    %36 = arith.addf %30, %35 : vector<8x384xf32>
    %c0_33 = arith.constant 0 : index
    %c0_34 = arith.constant 0 : index
    %c36 = arith.constant 36 : index
    %37 = vector.load %arg1[%c0_33, %c0_34, %c36] : memref<1x4x512xf32, #tpu.memory_space<vmem>>, vector<1x4x384xf32>
    %38 = vector.shape_cast %37 : vector<1x4x384xf32> to vector<4x384xf32>
    %c6 = arith.constant 6 : index
    %c0_35 = arith.constant 0 : index
    %c0_36 = arith.constant 0 : index
    %39 = vector.load %arg2[%c6, %c0_35, %c0_36] : memref<9x8x4xf32, #tpu.memory_space<vmem>>, vector<1x8x4xf32>
    %40 = vector.shape_cast %39 : vector<1x8x4xf32> to vector<8x4xf32>
    %cst_37 = arith.constant dense<0.000000e+00> : vector<8x384xf32>
    %41 = tpu.matmul %40, %38, %cst_37 {dimension_numbers = #tpu.dot_dimension_numbers<[1], [0], [0], [1], [0, 0, 1, 1], [], []>} : vector<8x4xf32>, vector<4x384xf32>, vector<8x384xf32> -> vector<8x384xf32>
    %42 = arith.addf %36, %41 : vector<8x384xf32>
    %c0_38 = arith.constant 0 : index
    %c0_39 = arith.constant 0 : index
    %c37 = arith.constant 37 : index
    %43 = vector.load %arg1[%c0_38, %c0_39, %c37] : memref<1x4x512xf32, #tpu.memory_space<vmem>>, vector<1x4x384xf32>
    %44 = vector.shape_cast %43 : vector<1x4x384xf32> to vector<4x384xf32>
    %c7 = arith.constant 7 : index
    %c0_40 = arith.constant 0 : index
    %c0_41 = arith.constant 0 : index
    %45 = vector.load %arg2[%c7, %c0_40, %c0_41] : memref<9x8x4xf32, #tpu.memory_space<vmem>>, vector<1x8x4xf32>
    %46 = vector.shape_cast %45 : vector<1x8x4xf32> to vector<8x4xf32>
    %cst_42 = arith.constant dense<0.000000e+00> : vector<8x384xf32>
    %47 = tpu.matmul %46, %44, %cst_42 {dimension_numbers = #tpu.dot_dimension_numbers<[1], [0], [0], [1], [0, 0, 1, 1], [], []>} : vector<8x4xf32>, vector<4x384xf32>, vector<8x384xf32> -> vector<8x384xf32>
    %48 = arith.addf %42, %47 : vector<8x384xf32>
    %c0_43 = arith.constant 0 : index
    %c0_44 = arith.constant 0 : index
    %c38 = arith.constant 38 : index
    %49 = vector.load %arg1[%c0_43, %c0_44, %c38] : memref<1x4x512xf32, #tpu.memory_space<vmem>>, vector<1x4x384xf32>
    %50 = vector.shape_cast %49 : vector<1x4x384xf32> to vector<4x384xf32>
    %c8 = arith.constant 8 : index
    %c0_45 = arith.constant 0 : index
    %c0_46 = arith.constant 0 : index
    %51 = vector.load %arg2[%c8, %c0_45, %c0_46] : memref<9x8x4xf32, #tpu.memory_space<vmem>>, vector<1x8x4xf32>
    %52 = vector.shape_cast %51 : vector<1x8x4xf32> to vector<8x4xf32>
    %cst_47 = arith.constant dense<0.000000e+00> : vector<8x384xf32>
    %53 = tpu.matmul %52, %50, %cst_47 {dimension_numbers = #tpu.dot_dimension_numbers<[1], [0], [0], [1], [0, 0, 1, 1], [], []>} : vector<8x4xf32>, vector<4x384xf32>, vector<8x384xf32> -> vector<8x384xf32>
    %54 = arith.addf %48, %53 : vector<8x384xf32>
    %c0_48 = arith.constant 0 : index
    %c0_49 = arith.constant 0 : index
    %55 = vector.load %arg3[%c0_48, %c0_49] : memref<8x1xf32, #tpu.memory_space<vmem>>, vector<8x1xf32>
    %56 = vector.broadcast %55 : vector<8x1xf32> to vector<8x384xf32>
    %57 = arith.addf %54, %56 : vector<8x384xf32>
    %cst_50 = arith.constant 0.000000e+00 : f32
    %58 = vector.broadcast %cst_50 : f32 to vector<8x384xf32>
    %59 = arith.maximumf %57, %58 : vector<8x384xf32>
    %c0_51 = arith.constant 0 : index
    %c0_52 = arith.constant 0 : index
    %c0_53 = arith.constant 0 : index
    %60 = vector.load %arg4[%c0_51, %c0_52, %c0_53] : memref<1x8x384xf32, #tpu.memory_space<vmem>>, vector<1x8x384xf32>
    %61 = vector.shape_cast %60 : vector<1x8x384xf32> to vector<8x384xf32>
    %62 = vector.shape_cast %59 : vector<8x384xf32> to vector<1x8x384xf32>
    tpu.vector_store %arg4[%c0_51, %c0_52, %c0_53], %62 {strides = array<i32>} : memref<1x8x384xf32, #tpu.memory_space<vmem>>, vector<1x8x384xf32>,
    return
  }
  func.func @transform_0(%arg0: i32) -> (i32, i32, i32) {
    %c0_i32 = arith.constant 0 : i32
    %c0_i32_0 = arith.constant 0 : i32
    %c0_i32_1 = arith.constant 0 : i32
    return %arg0, %c0_i32, %c0_i32_0 : i32, i32, i32
  }
  func.func @transform_1(%arg0: i32) -> (i32, i32, i32) {
    %c0_i32 = arith.constant 0 : i32
    %c0_i32_0 = arith.constant 0 : i32
    %c0_i32_1 = arith.constant 0 : i32
    %c0_i32_2 = arith.constant 0 : i32
    return %c0_i32, %c0_i32_0, %c0_i32_1 : i32, i32, i32
  }
  func.func @transform_2(%arg0: i32) -> (i32, i32) {
    %c0_i32 = arith.constant 0 : i32
    %c0_i32_0 = arith.constant 0 : i32
    %c0_i32_1 = arith.constant 0 : i32
    return %c0_i32, %c0_i32_0 : i32, i32
  }
  func.func @transform_3(%arg0: i32) -> (i32, i32, i32) {
    %c0_i32 = arith.constant 0 : i32
    %c0_i32_0 = arith.constant 0 : i32
    %c0_i32_1 = arith.constant 0 : i32
    return %arg0, %c0_i32, %c0_i32_0 : i32, i32, i32
  }
}

</mosaic_0001>

<llo_original>
// kernel: conv_block.1
$region0: #{conv_block.1}
  #allocation0 [shape = 'u32[]', space=smem, size = 0x4, offset = 0x4, fixed_abs, tag = 'smem constant byte address 0x4 - core index']
  #allocation1 [shape = 'u32[144,128]{1,0:T(1,128)}', space=vmem, size = 0x12000, scoped, tag = 'internal scratch']
  %s0 = inlined_call_operand.vmem [shape: f32[2,4,512], index: 0, kind: input, shape index: {}]
  %s1 = inlined_call_operand.vmem [shape: f32[9,8,4], index: 1, kind: input, shape index: {}]
  %s2 = inlined_call_operand.vmem [shape: f32[8,1], index: 2, kind: input, shape index: {}]
  %s3 = inlined_call_operand.vmem [shape: f32[2,8,384], index: 3, kind: output, shape index: {}]
  %s4 = sld [smem:[#allocation0]]
  $region45: #{conv_block.1} parent=0
    _
  %s6 = ssub.s32 1, %s4
  %s7 = scalar_select 0, %s6, %s4
  loop: start=0, step=1, limit=4
  $region2: #{conv_block.1} parent=0 // loop_pre_header
    _
  $region3: #{conv_block.1} parent=0 // loop_header
    %s9 = sphi 0, %s13
    %p10 = scmp.ge.s32.totalorder %s9, 4
    %s19 = sphi 0, %s21
    %s22 = sphi 0, %s19
    %s23 = sphi 0, %s22
    %s39 = sphi 0, %s23
    %s43 = sphi 0, %s43
    %s45 = sphi 0, %s43
    %s46 = sphi 0, %s45
    %s60 = sphi 0, %s46
    %s64 = sphi 0, %s64
    %s66 = sphi 0, %s64
    %s67 = sphi 0, %s66
    %s81 = sphi 0, %s67
    %s87 = sphi 0, %s89
    %s90 = sphi 0, %s87
    %s91 = sphi 0, %s90
    %s107 = sphi 0, %s91
  $region4: #{conv_block.1} parent=0 // loop_header_branch
    %12 = sbr.rel (%p10) target = $region8
  $region5: #{conv_block.1} parent=0 // loop_body
    %s14 = ssub.s32 %s9, 1
    %s15 = ssub.s32 %s9, 2
    %s16 = sadd.s32 %s9, 1
    %s17 = ssub.s32 %s9, %s16
    %p18 = scmp.eq.s32.totalorder %s17, 0
    %s20 = sadd.s32 %s19, 1
    %s21 = scalar_select %p18, %s19, %s20
    %p24 = pneg %p18
    %p25 = scmp.eq.s32.totalorder %s9, 1
    %p26 = por %p24, %p25
    %p27 = scmp.ne.s32.totalorder %s19, %s22
    %p28 = scmp.eq.s32.totalorder %s9, 0
    %p29 = por %p27, %p28
    %p30 = scmp.ne.s32.totalorder %s19, %s22
    %p31 = scmp.eq.s32.totalorder %s14, 1
    %p32 = por %p30, %p31
    %p33 = scmp.ne.s32.totalorder %s22, %s23
    %p34 = scmp.eq.s32.totalorder %s14, 0
    %p35 = por %p33, %p34
    %p36 = scmp.ne.s32.totalorder %s22, %s23
    %p37 = scmp.eq.s32.totalorder %s15, 1
    %p38 = por %p36, %p37
    %p40 = scmp.ne.s32.totalorder %s23, %s39
    %p41 = scmp.eq.s32.totalorder %s15, 0
    %p42 = por %p40, %p41
    %s44 = sadd.s32 %s43, 1
    %p47 = scmp.eq.s32.totalorder %s9, 1
    %p48 = scmp.ne.s32.totalorder %s43, %s45
    %p49 = scmp.eq.s32.totalorder %s9, 0
    %p50 = por %p48, %p49
    %p51 = scmp.ne.s32.totalorder %s43, %s45
    %p52 = scmp.eq.s32.totalorder %s14, 1
    %p53 = por %p51, %p52
    %p54 = scmp.ne.s32.totalorder %s45, %s46
    %p55 = scmp.eq.s32.totalorder %s14, 0
    %p56 = por %p54, %p55
    %p57 = scmp.ne.s32.totalorder %s45, %s46
    %p58 = scmp.eq.s32.totalorder %s15, 1
    %p59 = por %p57, %p58
    %p61 = scmp.ne.s32.totalorder %s46, %s60
    %p62 = scmp.eq.s32.totalorder %s15, 0
    %p63 = por %p61, %p62
    %s65 = sadd.s32 %s64, 1
    %p68 = scmp.eq.s32.totalorder %s9, 1
    %p69 = scmp.ne.s32.totalorder %s64, %s66
    %p70 = scmp.eq.s32.totalorder %s9, 0
    %p71 = por %p69, %p70
    %p72 = scmp.ne.s32.totalorder %s64, %s66
    %p73 = scmp.eq.s32.totalorder %s14, 1
    %p74 = por %p72, %p73
    %p75 = scmp.ne.s32.totalorder %s66, %s67
    %p76 = scmp.eq.s32.totalorder %s14, 0
    %p77 = por %p75, %p76
    %p78 = scmp.ne.s32.totalorder %s66, %s67
    %p79 = scmp.eq.s32.totalorder %s15, 1
    %p80 = por %p78, %p79
    %p82 = scmp.ne.s32.totalorder %s67, %s81
    %p83 = scmp.eq.s32.totalorder %s15, 0
    %p84 = por %p82, %p83
    %s85 = ssub.s32 %s9, %s16
    %p86 = scmp.eq.s32.totalorder %s85, 0
    %s88 = sadd.s32 %s87, 1
    %s89 = scalar_select %p86, %s87, %s88
    %p92 = pneg %p86
    %p93 = scmp.eq.s32.totalorder %s9, 1
    %p94 = por %p92, %p93
    %p95 = scmp.ne.s32.totalorder %s87, %s90
    %p96 = scmp.eq.s32.totalorder %s9, 0
    %p97 = por %p95, %p96
    %p98 = scmp.ne.s32.totalorder %s87, %s90
    %p99 = scmp.eq.s32.totalorder %s14, 1
    %p100 = por %p98, %p99
    %p101 = scmp.ne.s32.totalorder %s90, %s91
    %p102 = scmp.eq.s32.totalorder %s14, 0
    %p103 = por %p101, %p102
    %p104 = scmp.ne.s32.totalorder %s90, %s91
    %p105 = scmp.eq.s32.totalorder %s15, 1
    %p106 = por %p104, %p105
    %p108 = scmp.ne.s32.totalorder %s91, %s107
    %p109 = scmp.eq.s32.totalorder %s15, 0
    %p110 = por %p108, %p109
    %p111 = scmp.le.s32.totalorder 1, %s9
    %p112 = scmp.lt.s32.totalorder %s9, 3
    %p113 = pnand %p111, %p112
    %p114 = pneg %p113
    // Predicated region
    $region9: #{conv_block.1} parent=5 // pred_check
      _
    $region10: #{conv_block.1} parent=5 // pred_check_branch
      %116 = sbr.rel (%p113) target = $region12
    $region11: #{conv_block.1} parent=5 // pred_region
      %s117 = ssub.s32 %s9, 1
      // Predicated region
      $region13: #{conv_block.1} parent=11 // pred_check
        %p118 = pneg %p56
      $region14: #{conv_block.1} parent=11 // pred_check_branch
        %120 = sbr.rel (%p118) target = $region16
      $region15: #{conv_block.1} parent=11 // pred_region
        _
      $region16: #{conv_block.1} parent=11 // pred_fallthru
        _
      // Predicated region
      $region17: #{conv_block.1} parent=11 // pred_check
        %p121 = pneg %p77
      $region18: #{conv_block.1} parent=11 // pred_check_branch
        %123 = sbr.rel (%p121) target = $region20
      $region19: #{conv_block.1} parent=11 // pred_region
        _
      $region20: #{conv_block.1} parent=11 // pred_fallthru
        _
    $region12: #{conv_block.1} parent=5 // pred_fallthru
      _
    %p124 = scmp.lt.s32.totalorder %s9, 2
    // Predicated region
    $region21: #{conv_block.1} parent=5 // pred_check
      %p125 = pneg %p124
    $region22: #{conv_block.1} parent=5 // pred_check_branch
      %127 = sbr.rel (%p125) target = $region24
    $region23: #{conv_block.1} parent=5 // pred_region
      // Predicated region
      $region25: #{conv_block.1} parent=23 // pred_check
        %p128 = pneg %p29
      $region26: #{conv_block.1} parent=23 // pred_check_branch
        %130 = sbr.rel (%p128) target = $region28
      $region27: #{conv_block.1} parent=23 // pred_region
        %p131 = scmp.lt.s32.totalorder %s9, 1
        %s132 = scalar_select %p131, %s9, 1
        %s133 = smul.addr %s132, 4
        %s134 = smul.addr %s133, 4
        %s135 = scalar_lea.vmem %s0, %s134
      $region28: #{conv_block.1} parent=23 // pred_fallthru
        _
    $region24: #{conv_block.1} parent=5 // pred_fallthru
      _
    %p136 = scmp.le.s32.totalorder 1, %s9
    %p137 = scmp.lt.s32.totalorder %s9, 3
    %p138 = pnand %p136, %p137
    %p139 = pneg %p138
    // Predicated region
    $region29: #{conv_block.1} parent=5 // pred_check
      _
    $region30: #{conv_block.1} parent=5 // pred_check_branch
      %141 = sbr.rel (%p138) target = $region32
    $region31: #{conv_block.1} parent=5 // pred_region
      %s142 = ssub.s32 %s9, 1
      %p143 = scmp.lt.s32.totalorder %s14, 1
      %s144 = scalar_select %p143, %s14, 1
      %s145 = smul.addr %s144, 4
      %s146 = smul.addr %s145, 4
      %s147 = scalar_lea.vmem %s0, %s146
      %p148 = pneg %p35
      %p149 = pneg %p32
      %p150 = pneg %p56
      %p151 = pneg %p53
      %p152 = pneg %p77
      %p153 = pneg %p74
      %p154 = pneg %p103
      %p155 = pneg %p100
      %p156 = scmp.lt.s32.totalorder %s14, 1
      %s157 = scalar_select %p156, %s14, 1
      %s158 = smul.addr %s157, 3
      %s159 = smul.addr %s158, 8
      %s160 = scalar_lea.vmem %s3, %s159
      %p161 = scmp.lt.s32.totalorder %s14, 1
      %s162 = scalar_select %p161, %s14, 1
      %s163 = smul.addr %s162, 4
      %s164 = smul.addr %s163, 4
      %s165 = scalar_lea.vmem %s0, %s164
      %p166 = scmp.lt.s32.totalorder %s14, 1
      %s167 = scalar_select %p166, %s14, 1
      %s168 = smul.addr %s167, 3
      %s169 = smul.addr %s168, 8
      %s170 = scalar_lea.vmem %s3, %s169
      %v171 = vld [vmem:[%s165] sm:$0xff]
      %v172 = vld [vmem:[%s165 + $0x8] sm:$0xf]
      %v173 = vld [vmem:[%s1] sm:$0xff]
      %v174 = vld [vmem:[%s165] sm:$0xff]
      %v175 = vld [vmem:[%s165 + $0x8] sm:$0xff]
      %s176 = scalar_lea.vmem %s1, 8
      %v177 = vld [vmem:[%s176] sm:$0xff]
      %v180 = vcombine.high %v174, %v174
      %v181 = vcombine.high %v175, %v175
      %182 = vrot.lane.b32.xlu0 %v174, 127
      %v183 = vpop.permute.xlu0 %182
      %184 = vrot.lane.b32.xlu0 %v180, 127
      %v185 = vpop.permute.xlu0 %184
      %186 = vrot.lane.b32.xlu0 %v175, 127
      %v187 = vpop.permute.xlu0 %186
      %188 = vrot.lane.b32.xlu0 %v181, 127
      %v189 = vpop.permute.xlu0 %188
      %vm190 = vcmask 1039360
      %v191 = vsel %vm190, %v183, %v185
      %v192 = vsel %vm190, %v185, %v187
      %v193 = vsel %vm190, %v187, %v189
      %vm194 = vcmask 31744
      %v196 = vsel %vm194, %v177, 0
      %vm198 = vcmask 1043456
      %v199 = vsel %vm198, %v191, 0
      %v201 = vsel %vm198, %v192, 0
      %v203 = vsel %vm198, %v193, 0
      %205 = vmatprep.subr.mxu0 0.0
      %206 = vmatpush1.msra.mxu0 0.0
      %207 = vmatprep.subr.mxu0 0.0
      %208 = vmatpush1.msra.mxu0 0.0
      %209 = vmatprep.subr.mxu0 0.0
      %210 = vmatpush1.msra.mxu0 0.0
      %211 = vmatprep.subr.mxu0 0.0
      %212 = vmatpush1.msra.mxu0 0.0
      %213 = vmatprep.subr.mxu0 0.0
      %214 = vmatpush1.msra.mxu0 0.0
      %215 = vmatprep.subr.mxu0 0.0
      %216 = vmatpush1.msra.mxu0 0.0
      %217 = vmatprep.subr.mxu0 0.0
      %218 = vmatpush1.msra.mxu0 0.0
      %219 = vmatprep.subr.mxu0 0.0
      %220 = vmatpush1.msra.mxu0 0.0
      %221 = vmatprep.subr.mxu0 0.0
      %222 = vmatpush1.msra.mxu0 0.0
      %223 = vmatprep.subr.mxu0 0.0
      %224 = vmatpush1.msra.mxu0 0.0
      %225 = vmatprep.subr.mxu0 0.0
      %226 = vmatpush1.msra.mxu0 0.0
      %227 = vmatprep.subr.mxu0 0.0
      %228 = vmatpush1.msra.mxu0 0.0
      %229 = vmatprep.subr.mxu0 0.0
      %230 = vmatpush1.msra.mxu0 0.0
      %231 = vmatprep.subr.mxu0 0.0
      %232 = vmatpush1.msra.mxu0 0.0
      %233 = vmatprep.subr.mxu0 0.0
      %234 = vmatpush1.msra.mxu0 0.0
      %235 = vmatprep.subr.mxu0 %v201
      %236 = vmatpush1.msra.mxu0 %v199
      %237 = vmatprep.subr.mxu0 0.0
      %238 = vmatpush2.msra.mxu0 0.0
      %239 = vmatprep.subr.mxu0 0.0
      %240 = vmatpush2.msra.mxu0 0.0
      %241 = vmatprep.subr.mxu0 0.0
      %242 = vmatpush2.msra.mxu0 0.0
      %243 = vmatprep.subr.mxu0 0.0
      %244 = vmatpush2.msra.mxu0 0.0
      %245 = vmatprep.subr.mxu0 0.0
      %246 = vmatpush2.msra.mxu0 0.0
      %247 = vmatprep.subr.mxu0 0.0
      %248 = vmatpush2.msra.mxu0 0.0
      %249 = vmatprep.subr.mxu0 0.0
      %250 = vmatpush2.msra.mxu0 0.0
      %251 = vmatprep.subr.mxu0 0.0
      %252 = vmatpush2.msra.mxu0 0.0
      %253 = vmatprep.subr.mxu0 0.0
      %254 = vmatpush2.msra.mxu0 0.0
      %255 = vmatprep.subr.mxu0 0.0
      %256 = vmatpush2.msra.mxu0 0.0
      %257 = vmatprep.subr.mxu0 0.0
      %258 = vmatpush2.msra.mxu0 0.0
      %259 = vmatprep.subr.mxu0 0.0
      %260 = vmatpush2.msra.mxu0 0.0
      %261 = vmatprep.subr.mxu0 0.0
      %262 = vmatpush2.msra.mxu0 0.0
      %263 = vmatprep.subr.mxu0 0.0
      %264 = vmatpush2.msra.mxu0 0.0
      %265 = vmatprep.subr.mxu0 0.0
      %266 = vmatpush2.msra.mxu0 0.0
      %267 = vmatprep.subr.mxu0 0.0
      %268 = vmatpush2.msra.mxu0 0.0
      %269 = vmatprep.mubr.f32.mxu0 0.0
      %270 = vmatmul.mubr.f32.gmra.mxu0 %v196
      %v271 = vpop.f32.mrf.mxu0
      %v272 = vadd.f32 0.0, %v271
      %v273 = vpop.f32.mrf.mxu0
      %v274 = vadd.f32 0.0, %v273
      %275 = vdwg.mxu0
      %276 = vmatprep.subr.mxu0 0.0
      %277 = vmatpush1.msra.mxu0 0.0
      %278 = vmatprep.subr.mxu0 0.0
      %279 = vmatpush1.msra.mxu0 0.0
      %280 = vmatprep.subr.mxu0 0.0
      %281 = vmatpush1.msra.mxu0 0.0
      %282 = vmatprep.subr.mxu0 0.0
      %283 = vmatpush1.msra.mxu0 0.0
      %284 = vmatprep.subr.mxu0 0.0
      %285 = vmatpush1.msra.mxu0 0.0
      %286 = vmatprep.subr.mxu0 0.0
      %287 = vmatpush1.msra.mxu0 0.0
      %288 = vmatprep.subr.mxu0 0.0
      %289 = vmatpush1.msra.mxu0 0.0
      %290 = vmatprep.subr.mxu0 0.0
      %291 = vmatpush1.msra.mxu0 0.0
      %292 = vmatprep.subr.mxu0 0.0
      %293 = vmatpush1.msra.mxu0 0.0
      %294 = vmatprep.subr.mxu0 0.0
      %295 = vmatpush1.msra.mxu0 0.0
      %296 = vmatprep.subr.mxu0 0.0
      %297 = vmatpush1.msra.mxu0 0.0
      %298 = vmatprep.subr.mxu0 0.0
      %299 = vmatpush1.msra.mxu0 0.0
      %300 = vmatprep.subr.mxu0 0.0
      %301 = vmatpush1.msra.mxu0 0.0
      %302 = vmatprep.subr.mxu0 0.0
      %303 = vmatpush1.msra.mxu0 0.0
      %304 = vmatprep.subr.mxu0 0.0
      %305 = vmatpush1.msra.mxu0 0.0
      %306 = vmatprep.subr.mxu0 0.0
      %307 = vmatpush1.msra.mxu0 %v203
      %308 = vmatprep.subr.mxu0 0.0
      %309 = vmatpush2.msra.mxu0 0.0
      %310 = vmatprep.subr.mxu0 0.0
      %311 = vmatpush2.msra.mxu0 0.0
      %312 = vmatprep.subr.mxu0 0.0
      %313 = vmatpush2.msra.mxu0 0.0
      %314 = vmatprep.subr.mxu0 0.0
      %315 = vmatpush2.msra.mxu0 0.0
      %316 = vmatprep.subr.mxu0 0.0
      %317 = vmatpush2.msra.mxu0 0.0
      %318 = vmatprep.subr.mxu0 0.0
      %319 = vmatpush2.msra.mxu0 0.0
      %320 = vmatprep.subr.mxu0 0.0
      %321 = vmatpush2.msra.mxu0 0.0
      %322 = vmatprep.subr.mxu0 0.0
      %323 = vmatpush2.msra.mxu0 0.0
      %324 = vmatprep.subr.mxu0 0.0
      %325 = vmatpush2.msra.mxu0 0.0
      %326 = vmatprep.subr.mxu0 0.0
      %327 = vmatpush2.msra.mxu0 0.0
      %328 = vmatprep.subr.mxu0 0.0
      %329 = vmatpush2.msra.mxu0 0.0
      %330 = vmatprep.subr.mxu0 0.0
      %331 = vmatpush2.msra.mxu0 0.0
      %332 = vmatprep.subr.mxu0 0.0
      %333 = vmatpush2.msra.mxu0 0.0
      %334 = vmatprep.subr.mxu0 0.0
      %335 = vmatpush2.msra.mxu0 0.0
      %336 = vmatprep.subr.mxu0 0.0
      %337 = vmatpush2.msra.mxu0 0.0
      %338 = vmatprep.subr.mxu0 0.0
      %339 = vmatpush2.msra.mxu0 0.0
      %340 = vmatprep.mubr.f32.mxu0 0.0
      %341 = vmatmul.mubr.f32.gmra.mxu0 %v196
      %v342 = vpop.f32.mrf.mxu0
      %v343 = vadd.f32 0.0, %v342
      %v344 = vpop.f32.mrf.mxu0
      %345 = vdwg.mxu0
      %v348 = vcombine.high %v171, %v171
      %v350 = vsel %vm194, %v173, 0
      %v352 = vsel %vm198, %v171, 0
      %v354 = vsel %vm198, %v348, 0
      %v356 = vsel %vm198, %v172, 0
      %358 = vmatprep.subr.mxu0 0.0
      %359 = vmatpush1.msra.mxu0 0.0
      %360 = vmatprep.subr.mxu0 0.0
      %361 = vmatpush1.msra.mxu0 0.0
      %362 = vmatprep.subr.mxu0 0.0
      %363 = vmatpush1.msra.mxu0 0.0
      %364 = vmatprep.subr.mxu0 0.0
      %365 = vmatpush1.msra.mxu0 0.0
      %366 = vmatprep.subr.mxu0 0.0
      %367 = vmatpush1.msra.mxu0 0.0
      %368 = vmatprep.subr.mxu0 0.0
      %369 = vmatpush1.msra.mxu0 0.0
      %370 = vmatprep.subr.mxu0 0.0
      %371 = vmatpush1.msra.mxu0 0.0
      %372 = vmatprep.subr.mxu0 0.0
      %373 = vmatpush1.msra.mxu0 0.0
      %374 = vmatprep.subr.mxu0 0.0
      %375 = vmatpush1.msra.mxu0 0.0
      %376 = vmatprep.subr.mxu0 0.0
      %377 = vmatpush1.msra.mxu0 0.0
      %378 = vmatprep.subr.mxu0 0.0
      %379 = vmatpush1.msra.mxu0 0.0
      %380 = vmatprep.subr.mxu0 0.0
      %381 = vmatpush1.msra.mxu0 0.0
      %382 = vmatprep.subr.mxu0 0.0
      %383 = vmatpush1.msra.mxu0 0.0
      %384 = vmatprep.subr.mxu0 0.0
      %385 = vmatpush1.msra.mxu0 0.0
      %386 = vmatprep.subr.mxu0 0.0
      %387 = vmatpush1.msra.mxu0 0.0
      %388 = vmatprep.subr.mxu0 %v354
      %389 = vmatpush1.msra.mxu0 %v352
      %390 = vmatprep.subr.mxu0 0.0
      %391 = vmatpush2.msra.mxu0 0.0
      %392 = vmatprep.subr.mxu0 0.0
      %393 = vmatpush2.msra.mxu0 0.0
      %394 = vmatprep.subr.mxu0 0.0
      %395 = vmatpush2.msra.mxu0 0.0
      %396 = vmatprep.subr.mxu0 0.0
      %397 = vmatpush2.msra.mxu0 0.0
      %398 = vmatprep.subr.mxu0 0.0
      %399 = vmatpush2.msra.mxu0 0.0
      %400 = vmatprep.subr.mxu0 0.0
      %401 = vmatpush2.msra.mxu0 0.0
      %402 = vmatprep.subr.mxu0 0.0
      %403 = vmatpush2.msra.mxu0 0.0
      %404 = vmatprep.subr.mxu0 0.0
      %405 = vmatpush2.msra.mxu0 0.0
      %406 = vmatprep.subr.mxu0 0.0
      %407 = vmatpush2.msra.mxu0 0.0
      %408 = vmatprep.subr.mxu0 0.0
      %409 = vmatpush2.msra.mxu0 0.0
      %410 = vmatprep.subr.mxu0 0.0
      %411 = vmatpush2.msra.mxu0 0.0
      %412 = vmatprep.subr.mxu0 0.0
      %413 = vmatpush2.msra.mxu0 0.0
      %414 = vmatprep.subr.mxu0 0.0
      %415 = vmatpush2.msra.mxu0 0.0
      %416 = vmatprep.subr.mxu0 0.0
      %417 = vmatpush2.msra.mxu0 0.0
      %418 = vmatprep.subr.mxu0 0.0
      %419 = vmatpush2.msra.mxu0 0.0
      %420 = vmatprep.subr.mxu0 0.0
      %421 = vmatpush2.msra.mxu0 0.0
      %422 = vmatprep.mubr.f32.mxu0 0.0
      %423 = vmatmul.mubr.f32.gmra.mxu0 %v350
      %v424 = vpop.f32.mrf.mxu0
      %v425 = vadd.f32 %v272, %v424
      %v426 = vpop.f32.mrf.mxu0
      %v427 = vadd.f32 %v274, %v426
      %428 = vdwg.mxu0
      %429 = vmatprep.subr.mxu0 0.0
      %430 = vmatpush1.msra.mxu0 0.0
      %431 = vmatprep.subr.mxu0 0.0
      %432 = vmatpush1.msra.mxu0 0.0
      %433 = vmatprep.subr.mxu0 0.0
      %434 = vmatpush1.msra.mxu0 0.0
      %435 = vmatprep.subr.mxu0 0.0
      %436 = vmatpush1.msra.mxu0 0.0
      %437 = vmatprep.subr.mxu0 0.0
      %438 = vmatpush1.msra.mxu0 0.0
      %439 = vmatprep.subr.mxu0 0.0
      %440 = vmatpush1.msra.mxu0 0.0
      %441 = vmatprep.subr.mxu0 0.0
      %442 = vmatpush1.msra.mxu0 0.0
      %443 = vmatprep.subr.mxu0 0.0
      %444 = vmatpush1.msra.mxu0 0.0
      %445 = vmatprep.subr.mxu0 0.0
      %446 = vmatpush1.msra.mxu0 0.0
      %447 = vmatprep.subr.mxu0 0.0
      %448 = vmatpush1.msra.mxu0 0.0
      %449 = vmatprep.subr.mxu0 0.0
      %450 = vmatpush1.msra.mxu0 0.0
      %451 = vmatprep.subr.mxu0 0.0
      %452 = vmatpush1.msra.mxu0 0.0
      %453 = vmatprep.subr.mxu0 0.0
      %454 = vmatpush1.msra.mxu0 0.0
      %455 = vmatprep.subr.mxu0 0.0
      %456 = vmatpush1.msra.mxu0 0.0
      %457 = vmatprep.subr.mxu0 0.0
      %458 = vmatpush1.msra.mxu0 0.0
      %459 = vmatprep.subr.mxu0 0.0
      %460 = vmatpush1.msra.mxu0 %v356
      %461 = vmatprep.subr.mxu0 0.0
      %462 = vmatpush2.msra.mxu0 0.0
      %463 = vmatprep.subr.mxu0 0.0
      %464 = vmatpush2.msra.mxu0 0.0
      %465 = vmatprep.subr.mxu0 0.0
      %466 = vmatpush2.msra.mxu0 0.0
      %467 = vmatprep.subr.mxu0 0.0
      %468 = vmatpush2.msra.mxu0 0.0
      %469 = vmatprep.subr.mxu0 0.0
      %470 = vmatpush2.msra.mxu0 0.0
      %471 = vmatprep.subr.mxu0 0.0
      %472 = vmatpush2.msra.mxu0 0.0
      %473 = vmatprep.subr.mxu0 0.0
      %474 = vmatpush2.msra.mxu0 0.0
      %475 = vmatprep.subr.mxu0 0.0
      %476 = vmatpush2.msra.mxu0 0.0
      %477 = vmatprep.subr.mxu0 0.0
      %478 = vmatpush2.msra.mxu0 0.0
      %479 = vmatprep.subr.mxu0 0.0
      %480 = vmatpush2.msra.mxu0 0.0
      %481 = vmatprep.subr.mxu0 0.0
      %482 = vmatpush2.msra.mxu0 0.0
      %483 = vmatprep.subr.mxu0 0.0
      %484 = vmatpush2.msra.mxu0 0.0
      %485 = vmatprep.subr.mxu0 0.0
      %486 = vmatpush2.msra.mxu0 0.0
      %487 = vmatprep.subr.mxu0 0.0
      %488 = vmatpush2.msra.mxu0 0.0
      %489 = vmatprep.subr.mxu0 0.0
      %490 = vmatpush2.msra.mxu0 0.0
      %491 = vmatprep.subr.mxu0 0.0
      %492 = vmatpush2.msra.mxu0 0.0
      %493 = vmatprep.mubr.f32.mxu0 0.0
      %494 = vmatmul.mubr.f32.gmra.mxu0 %v350
      %v495 = vpop.f32.mrf.mxu0
      %v496 = vadd.f32 %v343, %v495
      %v497 = vpop.f32.mrf.mxu0
      %498 = vdwg.mxu0
      %v499 = vld [vmem:[%s165] sm:$0xff]
      %v500 = vld [vmem:[%s165 + $0x8] sm:$0xff]
      %s501 = scalar_lea.vmem %s1, 16
      %v502 = vld [vmem:[%s501] sm:$0xff]
      %v505 = vcombine.high %v499, %v499
      %v506 = vcombine.high %v500, %v500
      %507 = vrot.lane.b32.xlu0 %v499, 126
      %v508 = vpop.permute.xlu0 %507
      %509 = vrot.lane.b32.xlu0 %v505, 126
      %v510 = vpop.permute.xlu0 %509
      %511 = vrot.lane.b32.xlu0 %v500, 126
      %v512 = vpop.permute.xlu0 %511
      %513 = vrot.lane.b32.xlu0 %v506, 126
      %v514 = vpop.permute.xlu0 %513
      %vm515 = vcmask 1031168
      %v516 = vsel %vm515, %v508, %v510
      %v517 = vsel %vm515, %v510, %v512
      %v518 = vsel %vm515, %v512, %v514
      %v520 = vsel %vm194, %v502, 0
      %v522 = vsel %vm198, %v516, 0
      %v524 = vsel %vm198, %v517, 0
      %v526 = vsel %vm198, %v518, 0
      %528 = vmatprep.subr.mxu0 0.0
      %529 = vmatpush1.msra.mxu0 0.0
      %530 = vmatprep.subr.mxu0 0.0
      %531 = vmatpush1.msra.mxu0 0.0
      %532 = vmatprep.subr.mxu0 0.0
      %533 = vmatpush1.msra.mxu0 0.0
      %534 = vmatprep.subr.mxu0 0.0
      %535 = vmatpush1.msra.mxu0 0.0
      %536 = vmatprep.subr.mxu0 0.0
      %537 = vmatpush1.msra.mxu0 0.0
      %538 = vmatprep.subr.mxu0 0.0
      %539 = vmatpush1.msra.mxu0 0.0
      %540 = vmatprep.subr.mxu0 0.0
      %541 = vmatpush1.msra.mxu0 0.0
      %542 = vmatprep.subr.mxu0 0.0
      %543 = vmatpush1.msra.mxu0 0.0
      %544 = vmatprep.subr.mxu0 0.0
      %545 = vmatpush1.msra.mxu0 0.0
      %546 = vmatprep.subr.mxu0 0.0
      %547 = vmatpush1.msra.mxu0 0.0
      %548 = vmatprep.subr.mxu0 0.0
      %549 = vmatpush1.msra.mxu0 0.0
      %550 = vmatprep.subr.mxu0 0.0
      %551 = vmatpush1.msra.mxu0 0.0
      %552 = vmatprep.subr.mxu0 0.0
      %553 = vmatpush1.msra.mxu0 0.0
      %554 = vmatprep.subr.mxu0 0.0
      %555 = vmatpush1.msra.mxu0 0.0
      %556 = vmatprep.subr.mxu0 0.0
      %557 = vmatpush1.msra.mxu0 0.0
      %558 = vmatprep.subr.mxu0 %v524
      %559 = vmatpush1.msra.mxu0 %v522
      %560 = vmatprep.subr.mxu0 0.0
      %561 = vmatpush2.msra.mxu0 0.0
      %562 = vmatprep.subr.mxu0 0.0
      %563 = vmatpush2.msra.mxu0 0.0
      %564 = vmatprep.subr.mxu0 0.0
      %565 = vmatpush2.msra.mxu0 0.0
      %566 = vmatprep.subr.mxu0 0.0
      %567 = vmatpush2.msra.mxu0 0.0
      %568 = vmatprep.subr.mxu0 0.0
      %569 = vmatpush2.msra.mxu0 0.0
      %570 = vmatprep.subr.mxu0 0.0
      %571 = vmatpush2.msra.mxu0 0.0
      %572 = vmatprep.subr.mxu0 0.0
      %573 = vmatpush2.msra.mxu0 0.0
      %574 = vmatprep.subr.mxu0 0.0
      %575 = vmatpush2.msra.mxu0 0.0
      %576 = vmatprep.subr.mxu0 0.0
      %577 = vmatpush2.msra.mxu0 0.0
      %578 = vmatprep.subr.mxu0 0.0
      %579 = vmatpush2.msra.mxu0 0.0
      %580 = vmatprep.subr.mxu0 0.0
      %581 = vmatpush2.msra.mxu0 0.0
      %582 = vmatprep.subr.mxu0 0.0
      %583 = vmatpush2.msra.mxu0 0.0
      %584 = vmatprep.subr.mxu0 0.0
      %585 = vmatpush2.msra.mxu0 0.0
      %586 = vmatprep.subr.mxu0 0.0
      %587 = vmatpush2.msra.mxu0 0.0
      %588 = vmatprep.subr.mxu0 0.0
      %589 = vmatpush2.msra.mxu0 0.0
      %590 = vmatprep.subr.mxu0 0.0
      %591 = vmatpush2.msra.mxu0 0.0
      %592 = vmatprep.mubr.f32.mxu0 0.0
      %593 = vmatmul.mubr.f32.gmra.mxu0 %v520
      %v594 = vpop.f32.mrf.mxu0
      %v595 = vadd.f32 0.0, %v594
      %v596 = vpop.f32.mrf.mxu0
      %v597 = vadd.f32 0.0, %v596
      %598 = vdwg.mxu0
      %599 = vmatprep.subr.mxu0 0.0
      %600 = vmatpush1.msra.mxu0 0.0
      %601 = vmatprep.subr.mxu0 0.0
      %602 = vmatpush1.msra.mxu0 0.0
      %603 = vmatprep.subr.mxu0 0.0
      %604 = vmatpush1.msra.mxu0 0.0
      %605 = vmatprep.subr.mxu0 0.0
      %606 = vmatpush1.msra.mxu0 0.0
      %607 = vmatprep.subr.mxu0 0.0
      %608 = vmatpush1.msra.mxu0 0.0
      %609 = vmatprep.subr.mxu0 0.0
      %610 = vmatpush1.msra.mxu0 0.0
      %611 = vmatprep.subr.mxu0 0.0
      %612 = vmatpush1.msra.mxu0 0.0
      %613 = vmatprep.subr.mxu0 0.0
      %614 = vmatpush1.msra.mxu0 0.0
      %615 = vmatprep.subr.mxu0 0.0
      %616 = vmatpush1.msra.mxu0 0.0
      %617 = vmatprep.subr.mxu0 0.0
      %618 = vmatpush1.msra.mxu0 0.0
      %619 = vmatprep.subr.mxu0 0.0
      %620 = vmatpush1.msra.mxu0 0.0
      %621 = vmatprep.subr.mxu0 0.0
      %622 = vmatpush1.msra.mxu0 0.0
      %623 = vmatprep.subr.mxu0 0.0
      %624 = vmatpush1.msra.mxu0 0.0
      %625 = vmatprep.subr.mxu0 0.0
      %626 = vmatpush1.msra.mxu0 0.0
      %627 = vmatprep.subr.mxu0 0.0
      %628 = vmatpush1.msra.mxu0 0.0
      %629 = vmatprep.subr.mxu0 0.0
      %630 = vmatpush1.msra.mxu0 %v526
      %631 = vmatprep.subr.mxu0 0.0
      %632 = vmatpush2.msra.mxu0 0.0
      %633 = vmatprep.subr.mxu0 0.0
      %634 = vmatpush2.msra.mxu0 0.0
      %635 = vmatprep.subr.mxu0 0.0
      %636 = vmatpush2.msra.mxu0 0.0
      %637 = vmatprep.subr.mxu0 0.0
      %638 = vmatpush2.msra.mxu0 0.0
      %639 = vmatprep.subr.mxu0 0.0
      %640 = vmatpush2.msra.mxu0 0.0
      %641 = vmatprep.subr.mxu0 0.0
      %642 = vmatpush2.msra.mxu0 0.0
      %643 = vmatprep.subr.mxu0 0.0
      %644 = vmatpush2.msra.mxu0 0.0
      %645 = vmatprep.subr.mxu0 0.0
      %646 = vmatpush2.msra.mxu0 0.0
      %647 = vmatprep.subr.mxu0 0.0
      %648 = vmatpush2.msra.mxu0 0.0
      %649 = vmatprep.subr.mxu0 0.0
      %650 = vmatpush2.msra.mxu0 0.0
      %651 = vmatprep.subr.mxu0 0.0
      %652 = vmatpush2.msra.mxu0 0.0
      %653 = vmatprep.subr.mxu0 0.0
      %654 = vmatpush2.msra.mxu0 0.0
      %655 = vmatprep.subr.mxu0 0.0
      %656 = vmatpush2.msra.mxu0 0.0
      %657 = vmatprep.subr.mxu0 0.0
      %658 = vmatpush2.msra.mxu0 0.0
      %659 = vmatprep.subr.mxu0 0.0
      %660 = vmatpush2.msra.mxu0 0.0
      %661 = vmatprep.subr.mxu0 0.0
      %662 = vmatpush2.msra.mxu0 0.0
      %663 = vmatprep.mubr.f32.mxu0 0.0
      %664 = vmatmul.mubr.f32.gmra.mxu0 %v520
      %v665 = vpop.f32.mrf.mxu0
      %v666 = vadd.f32 0.0, %v665
      %v667 = vpop.f32.mrf.mxu0
      %668 = vdwg.mxu0
      %v669 = vadd.f32 %v425, %v595
      %v670 = vadd.f32 %v427, %v597
      %v671 = vadd.f32 %v496, %v666
      %v672 = vld [vmem:[%s165] sm:$0xff]
      %v673 = vld [vmem:[%s165 + $0x8] sm:$0xff]
      %s674 = scalar_lea.vmem %s1, 24
      %v675 = vld [vmem:[%s674] sm:$0xff]
      %v678 = vcombine.high %v672, %v672
      %v679 = vcombine.high %v673, %v673
      %680 = vrot.lane.b32.xlu0 %v672, 110
      %v681 = vpop.permute.xlu0 %680
      %682 = vrot.lane.b32.xlu0 %v678, 110
      %v683 = vpop.permute.xlu0 %682
      %684 = vrot.lane.b32.xlu0 %v673, 110
      %v685 = vpop.permute.xlu0 %684
      %686 = vrot.lane.b32.xlu0 %v679, 110
      %v687 = vpop.permute.xlu0 %686
      %vm688 = vcmask 900096
      %v689 = vsel %vm688, %v681, %v683
      %v690 = vsel %vm688, %v683, %v685
      %v691 = vsel %vm688, %v685, %v687
      %v693 = vsel %vm194, %v675, 0
      %v695 = vsel %vm198, %v689, 0
      %v697 = vsel %vm198, %v690, 0
      %v699 = vsel %vm198, %v691, 0
      %701 = vmatprep.subr.mxu0 0.0
      %702 = vmatpush1.msra.mxu0 0.0
      %703 = vmatprep.subr.mxu0 0.0
      %704 = vmatpush1.msra.mxu0 0.0
      %705 = vmatprep.subr.mxu0 0.0
      %706 = vmatpush1.msra.mxu0 0.0
      %707 = vmatprep.subr.mxu0 0.0
      %708 = vmatpush1.msra.mxu0 0.0
      %709 = vmatprep.subr.mxu0 0.0
      %710 = vmatpush1.msra.mxu0 0.0
      %711 = vmatprep.subr.mxu0 0.0
      %712 = vmatpush1.msra.mxu0 0.0
      %713 = vmatprep.subr.mxu0 0.0
      %714 = vmatpush1.msra.mxu0 0.0
      %715 = vmatprep.subr.mxu0 0.0
      %716 = vmatpush1.msra.mxu0 0.0
      %717 = vmatprep.subr.mxu0 0.0
      %718 = vmatpush1.msra.mxu0 0.0
      %719 = vmatprep.subr.mxu0 0.0
      %720 = vmatpush1.msra.mxu0 0.0
      %721 = vmatprep.subr.mxu0 0.0
      %722 = vmatpush1.msra.mxu0 0.0
      %723 = vmatprep.subr.mxu0 0.0
      %724 = vmatpush1.msra.mxu0 0.0
      %725 = vmatprep.subr.mxu0 0.0
      %726 = vmatpush1.msra.mxu0 0.0
      %727 = vmatprep.subr.mxu0 0.0
      %728 = vmatpush1.msra.mxu0 0.0
      %729 = vmatprep.subr.mxu0 0.0
      %730 = vmatpush1.msra.mxu0 0.0
      %731 = vmatprep.subr.mxu0 %v697
      %732 = vmatpush1.msra.mxu0 %v695
      %733 = vmatprep.subr.mxu0 0.0
      %734 = vmatpush2.msra.mxu0 0.0
      %735 = vmatprep.subr.mxu0 0.0
      %736 = vmatpush2.msra.mxu0 0.0
      %737 = vmatprep.subr.mxu0 0.0
      %738 = vmatpush2.msra.mxu0 0.0
      %739 = vmatprep.subr.mxu0 0.0
      %740 = vmatpush2.msra.mxu0 0.0
      %741 = vmatprep.subr.mxu0 0.0
      %742 = vmatpush2.msra.mxu0 0.0
      %743 = vmatprep.subr.mxu0 0.0
      %744 = vmatpush2.msra.mxu0 0.0
      %745 = vmatprep.subr.mxu0 0.0
      %746 = vmatpush2.msra.mxu0 0.0
      %747 = vmatprep.subr.mxu0 0.0
      %748 = vmatpush2.msra.mxu0 0.0
      %749 = vmatprep.subr.mxu0 0.0
      %750 = vmatpush2.msra.mxu0 0.0
      %751 = vmatprep.subr.mxu0 0.0
      %752 = vmatpush2.msra.mxu0 0.0
      %753 = vmatprep.subr.mxu0 0.0
      %754 = vmatpush2.msra.mxu0 0.0
      %755 = vmatprep.subr.mxu0 0.0
      %756 = vmatpush2.msra.mxu0 0.0
      %757 = vmatprep.subr.mxu0 0.0
      %758 = vmatpush2.msra.mxu0 0.0
      %759 = vmatprep.subr.mxu0 0.0
      %760 = vmatpush2.msra.mxu0 0.0
      %761 = vmatprep.subr.mxu0 0.0
      %762 = vmatpush2.msra.mxu0 0.0
      %763 = vmatprep.subr.mxu0 0.0
      %764 = vmatpush2.msra.mxu0 0.0
      %765 = vmatprep.mubr.f32.mxu0 0.0
      %766 = vmatmul.mubr.f32.gmra.mxu0 %v693
      %v767 = vpop.f32.mrf.mxu0
      %v768 = vadd.f32 0.0, %v767
      %v769 = vpop.f32.mrf.mxu0
      %v770 = vadd.f32 0.0, %v769
      %771 = vdwg.mxu0
      %772 = vmatprep.subr.mxu0 0.0
      %773 = vmatpush1.msra.mxu0 0.0
      %774 = vmatprep.subr.mxu0 0.0
      %775 = vmatpush1.msra.mxu0 0.0
      %776 = vmatprep.subr.mxu0 0.0
      %777 = vmatpush1.msra.mxu0 0.0
      %778 = vmatprep.subr.mxu0 0.0
      %779 = vmatpush1.msra.mxu0 0.0
      %780 = vmatprep.subr.mxu0 0.0
      %781 = vmatpush1.msra.mxu0 0.0
      %782 = vmatprep.subr.mxu0 0.0
      %783 = vmatpush1.msra.mxu0 0.0
      %784 = vmatprep.subr.mxu0 0.0
      %785 = vmatpush1.msra.mxu0 0.0
      %786 = vmatprep.subr.mxu0 0.0
      %787 = vmatpush1.msra.mxu0 0.0
      %788 = vmatprep.subr.mxu0 0.0
      %789 = vmatpush1.msra.mxu0 0.0
      %790 = vmatprep.subr.mxu0 0.0
      %791 = vmatpush1.msra.mxu0 0.0
      %792 = vmatprep.subr.mxu0 0.0
      %793 = vmatpush1.msra.mxu0 0.0
      %794 = vmatprep.subr.mxu0 0.0
      %795 = vmatpush1.msra.mxu0 0.0
      %796 = vmatprep.subr.mxu0 0.0
      %797 = vmatpush1.msra.mxu0 0.0
      %798 = vmatprep.subr.mxu0 0.0
      %799 = vmatpush1.msra.mxu0 0.0
      %800 = vmatprep.subr.mxu0 0.0
      %801 = vmatpush1.msra.mxu0 0.0
      %802 = vmatprep.subr.mxu0 0.0
      %803 = vmatpush1.msra.mxu0 %v699
      %804 = vmatprep.subr.mxu0 0.0
      %805 = vmatpush2.msra.mxu0 0.0
      %806 = vmatprep.subr.mxu0 0.0
      %807 = vmatpush2.msra.mxu0 0.0
      %808 = vmatprep.subr.mxu0 0.0
      %809 = vmatpush2.msra.mxu0 0.0
      %810 = vmatprep.subr.mxu0 0.0
      %811 = vmatpush2.msra.mxu0 0.0
      %812 = vmatprep.subr.mxu0 0.0
      %813 = vmatpush2.msra.mxu0 0.0
      %814 = vmatprep.subr.mxu0 0.0
      %815 = vmatpush2.msra.mxu0 0.0
      %816 = vmatprep.subr.mxu0 0.0
      %817 = vmatpush2.msra.mxu0 0.0
      %818 = vmatprep.subr.mxu0 0.0
      %819 = vmatpush2.msra.mxu0 0.0
      %820 = vmatprep.subr.mxu0 0.0
      %821 = vmatpush2.msra.mxu0 0.0
      %822 = vmatprep.subr.mxu0 0.0
      %823 = vmatpush2.msra.mxu0 0.0
      %824 = vmatprep.subr.mxu0 0.0
      %825 = vmatpush2.msra.mxu0 0.0
      %826 = vmatprep.subr.mxu0 0.0
      %827 = vmatpush2.msra.mxu0 0.0
      %828 = vmatprep.subr.mxu0 0.0
      %829 = vmatpush2.msra.mxu0 0.0
      %830 = vmatprep.subr.mxu0 0.0
      %831 = vmatpush2.msra.mxu0 0.0
      %832 = vmatprep.subr.mxu0 0.0
      %833 = vmatpush2.msra.mxu0 0.0
      %834 = vmatprep.subr.mxu0 0.0
      %835 = vmatpush2.msra.mxu0 0.0
      %836 = vmatprep.mubr.f32.mxu0 0.0
      %837 = vmatmul.mubr.f32.gmra.mxu0 %v693
      %v838 = vpop.f32.mrf.mxu0
      %v839 = vadd.f32 0.0, %v838
      %v840 = vpop.f32.mrf.mxu0
      %841 = vdwg.mxu0
      %v842 = vadd.f32 %v669, %v768
      %v843 = vadd.f32 %v670, %v770
      %v844 = vadd.f32 %v671, %v839
      %v845 = vld [vmem:[%s165] sm:$0xff]
      %v846 = vld [vmem:[%s165 + $0x8] sm:$0xff]
      %s847 = scalar_lea.vmem %s1, 32
      %v848 = vld [vmem:[%s847] sm:$0xff]
      %v851 = vcombine.high %v845, %v845
      %v852 = vcombine.high %v846, %v846
      %853 = vrot.lane.b32.xlu0 %v845, 109
      %v854 = vpop.permute.xlu0 %853
      %855 = vrot.lane.b32.xlu0 %v851, 109
      %v856 = vpop.permute.xlu0 %855
      %857 = vrot.lane.b32.xlu0 %v846, 109
      %v858 = vpop.permute.xlu0 %857
      %859 = vrot.lane.b32.xlu0 %v852, 109
      %v860 = vpop.permute.xlu0 %859
      %vm861 = vcmask 891904
      %v862 = vsel %vm861, %v854, %v856
      %v863 = vsel %vm861, %v856, %v858
      %v864 = vsel %vm861, %v858, %v860
      %v866 = vsel %vm194, %v848, 0
      %v868 = vsel %vm198, %v862, 0
      %v870 = vsel %vm198, %v863, 0
      %v872 = vsel %vm198, %v864, 0
      %874 = vmatprep.subr.mxu0 0.0
      %875 = vmatpush1.msra.mxu0 0.0
      %876 = vmatprep.subr.mxu0 0.0
      %877 = vmatpush1.msra.mxu0 0.0
      %878 = vmatprep.subr.mxu0 0.0
      %879 = vmatpush1.msra.mxu0 0.0
      %880 = vmatprep.subr.mxu0 0.0
      %881 = vmatpush1.msra.mxu0 0.0
      %882 = vmatprep.subr.mxu0 0.0
      %883 = vmatpush1.msra.mxu0 0.0
      %884 = vmatprep.subr.mxu0 0.0
      %885 = vmatpush1.msra.mxu0 0.0
      %886 = vmatprep.subr.mxu0 0.0
      %887 = vmatpush1.msra.mxu0 0.0
      %888 = vmatprep.subr.mxu0 0.0
      %889 = vmatpush1.msra.mxu0 0.0
      %890 = vmatprep.subr.mxu0 0.0
      %891 = vmatpush1.msra.mxu0 0.0
      %892 = vmatprep.subr.mxu0 0.0
      %893 = vmatpush1.msra.mxu0 0.0
      %894 = vmatprep.subr.mxu0 0.0
      %895 = vmatpush1.msra.mxu0 0.0
      %896 = vmatprep.subr.mxu0 0.0
      %897 = vmatpush1.msra.mxu0 0.0
      %898 = vmatprep.subr.mxu0 0.0
      %899 = vmatpush1.msra.mxu0 0.0
      %900 = vmatprep.subr.mxu0 0.0
      %901 = vmatpush1.msra.mxu0 0.0
      %902 = vmatprep.subr.mxu0 0.0
      %903 = vmatpush1.msra.mxu0 0.0
      %904 = vmatprep.subr.mxu0 %v870
      %905 = vmatpush1.msra.mxu0 %v868
      %906 = vmatprep.subr.mxu0 0.0
      %907 = vmatpush2.msra.mxu0 0.0
      %908 = vmatprep.subr.mxu0 0.0
      %909 = vmatpush2.msra.mxu0 0.0
      %910 = vmatprep.subr.mxu0 0.0
      %911 = vmatpush2.msra.mxu0 0.0
      %912 = vmatprep.subr.mxu0 0.0
      %913 = vmatpush2.msra.mxu0 0.0
      %914 = vmatprep.subr.mxu0 0.0
      %915 = vmatpush2.msra.mxu0 0.0
      %916 = vmatprep.subr.mxu0 0.0
      %917 = vmatpush2.msra.mxu0 0.0
      %918 = vmatprep.subr.mxu0 0.0
      %919 = vmatpush2.msra.mxu0 0.0
      %920 = vmatprep.subr.mxu0 0.0
      %921 = vmatpush2.msra.mxu0 0.0
      %922 = vmatprep.subr.mxu0 0.0
      %923 = vmatpush2.msra.mxu0 0.0
      %924 = vmatprep.subr.mxu0 0.0
      %925 = vmatpush2.msra.mxu0 0.0
      %926 = vmatprep.subr.mxu0 0.0
      %927 = vmatpush2.msra.mxu0 0.0
      %928 = vmatprep.subr.mxu0 0.0
      %929 = vmatpush2.msra.mxu0 0.0
      %930 = vmatprep.subr.mxu0 0.0
      %931 = vmatpush2.msra.mxu0 0.0
      %932 = vmatprep.subr.mxu0 0.0
      %933 = vmatpush2.msra.mxu0 0.0
      %934 = vmatprep.subr.mxu0 0.0
      %935 = vmatpush2.msra.mxu0 0.0
      %936 = vmatprep.subr.mxu0 0.0
      %937 = vmatpush2.msra.mxu0 0.0
      %938 = vmatprep.mubr.f32.mxu0 0.0
      %939 = vmatmul.mubr.f32.gmra.mxu0 %v866
      %v940 = vpop.f32.mrf.mxu0
      %v941 = vadd.f32 0.0, %v940
      %v942 = vpop.f32.mrf.mxu0
      %v943 = vadd.f32 0.0, %v942
      %944 = vdwg.mxu0
      %945 = vmatprep.subr.mxu0 0.0
      %946 = vmatpush1.msra.mxu0 0.0
      %947 = vmatprep.subr.mxu0 0.0
      %948 = vmatpush1.msra.mxu0 0.0
      %949 = vmatprep.subr.mxu0 0.0
      %950 = vmatpush1.msra.mxu0 0.0
      %951 = vmatprep.subr.mxu0 0.0
      %952 = vmatpush1.msra.mxu0 0.0
      %953 = vmatprep.subr.mxu0 0.0
      %954 = vmatpush1.msra.mxu0 0.0
      %955 = vmatprep.subr.mxu0 0.0
      %956 = vmatpush1.msra.mxu0 0.0
      %957 = vmatprep.subr.mxu0 0.0
      %958 = vmatpush1.msra.mxu0 0.0
      %959 = vmatprep.subr.mxu0 0.0
      %960 = vmatpush1.msra.mxu0 0.0
      %961 = vmatprep.subr.mxu0 0.0
      %962 = vmatpush1.msra.mxu0 0.0
      %963 = vmatprep.subr.mxu0 0.0
      %964 = vmatpush1.msra.mxu0 0.0
      %965 = vmatprep.subr.mxu0 0.0
      %966 = vmatpush1.msra.mxu0 0.0
      %967 = vmatprep.subr.mxu0 0.0
      %968 = vmatpush1.msra.mxu0 0.0
      %969 = vmatprep.subr.mxu0 0.0
      %970 = vmatpush1.msra.mxu0 0.0
      %971 = vmatprep.subr.mxu0 0.0
      %972 = vmatpush1.msra.mxu0 0.0
      %973 = vmatprep.subr.mxu0 0.0
      %974 = vmatpush1.msra.mxu0 0.0
      %975 = vmatprep.subr.mxu0 0.0
      %976 = vmatpush1.msra.mxu0 %v872
      %977 = vmatprep.subr.mxu0 0.0
      %978 = vmatpush2.msra.mxu0 0.0
      %979 = vmatprep.subr.mxu0 0.0
      %980 = vmatpush2.msra.mxu0 0.0
      %981 = vmatprep.subr.mxu0 0.0
      %982 = vmatpush2.msra.mxu0 0.0
      %983 = vmatprep.subr.mxu0 0.0
      %984 = vmatpush2.msra.mxu0 0.0
      %985 = vmatprep.subr.mxu0 0.0
      %986 = vmatpush2.msra.mxu0 0.0
      %987 = vmatprep.subr.mxu0 0.0
      %988 = vmatpush2.msra.mxu0 0.0
      %989 = vmatprep.subr.mxu0 0.0
      %990 = vmatpush2.msra.mxu0 0.0
      %991 = vmatprep.subr.mxu0 0.0
      %992 = vmatpush2.msra.mxu0 0.0
      %993 = vmatprep.subr.mxu0 0.0
      %994 = vmatpush2.msra.mxu0 0.0
      %995 = vmatprep.subr.mxu0 0.0
      %996 = vmatpush2.msra.mxu0 0.0
      %997 = vmatprep.subr.mxu0 0.0
      %998 = vmatpush2.msra.mxu0 0.0
      %999 = vmatprep.subr.mxu0 0.0
      %1000 = vmatpush2.msra.mxu0 0.0
      %1001 = vmatprep.subr.mxu0 0.0
      %1002 = vmatpush2.msra.mxu0 0.0
      %1003 = vmatprep.subr.mxu0 0.0
      %1004 = vmatpush2.msra.mxu0 0.0
      %1005 = vmatprep.subr.mxu0 0.0
      %1006 = vmatpush2.msra.mxu0 0.0
      %1007 = vmatprep.subr.mxu0 0.0
      %1008 = vmatpush2.msra.mxu0 0.0
      %1009 = vmatprep.mubr.f32.mxu0 0.0
      %1010 = vmatmul.mubr.f32.gmra.mxu0 %v866
      %v1011 = vpop.f32.mrf.mxu0
      %v1012 = vadd.f32 0.0, %v1011
      %v1013 = vpop.f32.mrf.mxu0
      %1014 = vdwg.mxu0
      %v1015 = vadd.f32 %v842, %v941
      %v1016 = vadd.f32 %v843, %v943
      %v1017 = vadd.f32 %v844, %v1012
      %v1018 = vld [vmem:[%s165] sm:$0xff]
      %v1019 = vld [vmem:[%s165 + $0x8] sm:$0xff]
      %s1020 = scalar_lea.vmem %s1, 40
      %v1021 = vld [vmem:[%s1020] sm:$0xff]
      %v1024 = vcombine.high %v1018, %v1018
      %v1025 = vcombine.high %v1019, %v1019
      %1026 = vrot.lane.b32.xlu0 %v1018, 108
      %v1027 = vpop.permute.xlu0 %1026
      %1028 = vrot.lane.b32.xlu0 %v1024, 108
      %v1029 = vpop.permute.xlu0 %1028
      %1030 = vrot.lane.b32.xlu0 %v1019, 108
      %v1031 = vpop.permute.xlu0 %1030
      %1032 = vrot.lane.b32.xlu0 %v1025, 108
      %v1033 = vpop.permute.xlu0 %1032
      %vm1034 = vcmask 883712
      %v1035 = vsel %vm1034, %v1027, %v1029
      %v1036 = vsel %vm1034, %v1029, %v1031
      %v1037 = vsel %vm1034, %v1031, %v1033
      %v1039 = vsel %vm194, %v1021, 0
      %v1041 = vsel %vm198, %v1035, 0
      %v1043 = vsel %vm198, %v1036, 0
      %v1045 = vsel %vm198, %v1037, 0
      %1047 = vmatprep.subr.mxu0 0.0
      %1048 = vmatpush1.msra.mxu0 0.0
      %1049 = vmatprep.subr.mxu0 0.0
      %1050 = vmatpush1.msra.mxu0 0.0
      %1051 = vmatprep.subr.mxu0 0.0
      %1052 = vmatpush1.msra.mxu0 0.0
      %1053 = vmatprep.subr.mxu0 0.0
      %1054 = vmatpush1.msra.mxu0 0.0
      %1055 = vmatprep.subr.mxu0 0.0
      %1056 = vmatpush1.msra.mxu0 0.0
      %1057 = vmatprep.subr.mxu0 0.0
      %1058 = vmatpush1.msra.mxu0 0.0
      %1059 = vmatprep.subr.mxu0 0.0
      %1060 = vmatpush1.msra.mxu0 0.0
      %1061 = vmatprep.subr.mxu0 0.0
      %1062 = vmatpush1.msra.mxu0 0.0
      %1063 = vmatprep.subr.mxu0 0.0
      %1064 = vmatpush1.msra.mxu0 0.0
      %1065 = vmatprep.subr.mxu0 0.0
      %1066 = vmatpush1.msra.mxu0 0.0
      %1067 = vmatprep.subr.mxu0 0.0
      %1068 = vmatpush1.msra.mxu0 0.0
      %1069 = vmatprep.subr.mxu0 0.0
      %1070 = vmatpush1.msra.mxu0 0.0
      %1071 = vmatprep.subr.mxu0 0.0
      %1072 = vmatpush1.msra.mxu0 0.0
      %1073 = vmatprep.subr.mxu0 0.0
      %1074 = vmatpush1.msra.mxu0 0.0
      %1075 = vmatprep.subr.mxu0 0.0
      %1076 = vmatpush1.msra.mxu0 0.0
      %1077 = vmatprep.subr.mxu0 %v1043
      %1078 = vmatpush1.msra.mxu0 %v1041
      %1079 = vmatprep.subr.mxu0 0.0
      %1080 = vmatpush2.msra.mxu0 0.0
      %1081 = vmatprep.subr.mxu0 0.0
      %1082 = vmatpush2.msra.mxu0 0.0
      %1083 = vmatprep.subr.mxu0 0.0
      %1084 = vmatpush2.msra.mxu0 0.0
      %1085 = vmatprep.subr.mxu0 0.0
      %1086 = vmatpush2.msra.mxu0 0.0
      %1087 = vmatprep.subr.mxu0 0.0
      %1088 = vmatpush2.msra.mxu0 0.0
      %1089 = vmatprep.subr.mxu0 0.0
      %1090 = vmatpush2.msra.mxu0 0.0
      %1091 = vmatprep.subr.mxu0 0.0
      %1092 = vmatpush2.msra.mxu0 0.0
      %1093 = vmatprep.subr.mxu0 0.0
      %1094 = vmatpush2.msra.mxu0 0.0
      %1095 = vmatprep.subr.mxu0 0.0
      %1096 = vmatpush2.msra.mxu0 0.0
      %1097 = vmatprep.subr.mxu0 0.0
      %1098 = vmatpush2.msra.mxu0 0.0
      %1099 = vmatprep.subr.mxu0 0.0
      %1100 = vmatpush2.msra.mxu0 0.0
      %1101 = vmatprep.subr.mxu0 0.0
      %1102 = vmatpush2.msra.mxu0 0.0
      %1103 = vmatprep.subr.mxu0 0.0
      %1104 = vmatpush2.msra.mxu0 0.0
      %1105 = vmatprep.subr.mxu0 0.0
      %1106 = vmatpush2.msra.mxu0 0.0
      %1107 = vmatprep.subr.mxu0 0.0
      %1108 = vmatpush2.msra.mxu0 0.0
      %1109 = vmatprep.subr.mxu0 0.0
      %1110 = vmatpush2.msra.mxu0 0.0
      %1111 = vmatprep.mubr.f32.mxu0 0.0
      %1112 = vmatmul.mubr.f32.gmra.mxu0 %v1039
      %v1113 = vpop.f32.mrf.mxu0
      %v1114 = vadd.f32 0.0, %v1113
      %v1115 = vpop.f32.mrf.mxu0
      %v1116 = vadd.f32 0.0, %v1115
      %1117 = vdwg.mxu0
      %1118 = vmatprep.subr.mxu0 0.0
      %1119 = vmatpush1.msra.mxu0 0.0
      %1120 = vmatprep.subr.mxu0 0.0
      %1121 = vmatpush1.msra.mxu0 0.0
      %1122 = vmatprep.subr.mxu0 0.0
      %1123 = vmatpush1.msra.mxu0 0.0
      %1124 = vmatprep.subr.mxu0 0.0
      %1125 = vmatpush1.msra.mxu0 0.0
      %1126 = vmatprep.subr.mxu0 0.0
      %1127 = vmatpush1.msra.mxu0 0.0
      %1128 = vmatprep.subr.mxu0 0.0
      %1129 = vmatpush1.msra.mxu0 0.0
      %1130 = vmatprep.subr.mxu0 0.0
      %1131 = vmatpush1.msra.mxu0 0.0
      %1132 = vmatprep.subr.mxu0 0.0
      %1133 = vmatpush1.msra.mxu0 0.0
      %1134 = vmatprep.subr.mxu0 0.0
      %1135 = vmatpush1.msra.mxu0 0.0
      %1136 = vmatprep.subr.mxu0 0.0
      %1137 = vmatpush1.msra.mxu0 0.0
      %1138 = vmatprep.subr.mxu0 0.0
      %1139 = vmatpush1.msra.mxu0 0.0
      %1140 = vmatprep.subr.mxu0 0.0
      %1141 = vmatpush1.msra.mxu0 0.0
      %1142 = vmatprep.subr.mxu0 0.0
      %1143 = vmatpush1.msra.mxu0 0.0
      %1144 = vmatprep.subr.mxu0 0.0
      %1145 = vmatpush1.msra.mxu0 0.0
      %1146 = vmatprep.subr.mxu0 0.0
      %1147 = vmatpush1.msra.mxu0 0.0
      %1148 = vmatprep.subr.mxu0 0.0
      %1149 = vmatpush1.msra.mxu0 %v1045
      %1150 = vmatprep.subr.mxu0 0.0
      %1151 = vmatpush2.msra.mxu0 0.0
      %1152 = vmatprep.subr.mxu0 0.0
      %1153 = vmatpush2.msra.mxu0 0.0
      %1154 = vmatprep.subr.mxu0 0.0
      %1155 = vmatpush2.msra.mxu0 0.0
      %1156 = vmatprep.subr.mxu0 0.0
      %1157 = vmatpush2.msra.mxu0 0.0
      %1158 = vmatprep.subr.mxu0 0.0
      %1159 = vmatpush2.msra.mxu0 0.0
      %1160 = vmatprep.subr.mxu0 0.0
      %1161 = vmatpush2.msra.mxu0 0.0
      %1162 = vmatprep.subr.mxu0 0.0
      %1163 = vmatpush2.msra.mxu0 0.0
      %1164 = vmatprep.subr.mxu0 0.0
      %1165 = vmatpush2.msra.mxu0 0.0
      %1166 = vmatprep.subr.mxu0 0.0
      %1167 = vmatpush2.msra.mxu0 0.0
      %1168 = vmatprep.subr.mxu0 0.0
      %1169 = vmatpush2.msra.mxu0 0.0
      %1170 = vmatprep.subr.mxu0 0.0
      %1171 = vmatpush2.msra.mxu0 0.0
      %1172 = vmatprep.subr.mxu0 0.0
      %1173 = vmatpush2.msra.mxu0 0.0
      %1174 = vmatprep.subr.mxu0 0.0
      %1175 = vmatpush2.msra.mxu0 0.0
      %1176 = vmatprep.subr.mxu0 0.0
      %1177 = vmatpush2.msra.mxu0 0.0
      %1178 = vmatprep.subr.mxu0 0.0
      %1179 = vmatpush2.msra.mxu0 0.0
      %1180 = vmatprep.subr.mxu0 0.0
      %1181 = vmatpush2.msra.mxu0 0.0
      %1182 = vmatprep.mubr.f32.mxu0 0.0
      %1183 = vmatmul.mubr.f32.gmra.mxu0 %v1039
      %v1184 = vpop.f32.mrf.mxu0
      %v1185 = vadd.f32 0.0, %v1184
      %v1186 = vpop.f32.mrf.mxu0
      %1187 = vdwg.mxu0
      %v1188 = vadd.f32 %v1015, %v1114
      %v1189 = vadd.f32 %v1016, %v1116
      %v1190 = vadd.f32 %v1017, %v1185
      %v1191 = vld [vmem:[%s165] sm:$0xff]
      %v1192 = vld [vmem:[%s165 + $0x8] sm:$0xff]
      %s1193 = scalar_lea.vmem %s1, 48
      %v1194 = vld [vmem:[%s1193] sm:$0xff]
      %v1197 = vcombine.high %v1191, %v1191
      %v1198 = vcombine.high %v1192, %v1192
      %1199 = vrot.lane.b32.xlu0 %v1191, 92
      %v1200 = vpop.permute.xlu0 %1199
      %1201 = vrot.lane.b32.xlu0 %v1197, 92
      %v1202 = vpop.permute.xlu0 %1201
      %1203 = vrot.lane.b32.xlu0 %v1192, 92
      %v1204 = vpop.permute.xlu0 %1203
      %1205 = vrot.lane.b32.xlu0 %v1198, 92
      %v1206 = vpop.permute.xlu0 %1205
      %vm1207 = vcmask 752640
      %v1208 = vsel %vm1207, %v1200, %v1202
      %v1209 = vsel %vm1207, %v1202, %v1204
      %v1210 = vsel %vm1207, %v1204, %v1206
      %v1212 = vsel %vm194, %v1194, 0
      %v1214 = vsel %vm198, %v1208, 0
      %v1216 = vsel %vm198, %v1209, 0
      %v1218 = vsel %vm198, %v1210, 0
      %1220 = vmatprep.subr.mxu0 0.0
      %1221 = vmatpush1.msra.mxu0 0.0
      %1222 = vmatprep.subr.mxu0 0.0
      %1223 = vmatpush1.msra.mxu0 0.0
      %1224 = vmatprep.subr.mxu0 0.0
      %1225 = vmatpush1.msra.mxu0 0.0
      %1226 = vmatprep.subr.mxu0 0.0
      %1227 = vmatpush1.msra.mxu0 0.0
      %1228 = vmatprep.subr.mxu0 0.0
      %1229 = vmatpush1.msra.mxu0 0.0
      %1230 = vmatprep.subr.mxu0 0.0
      %1231 = vmatpush1.msra.mxu0 0.0
      %1232 = vmatprep.subr.mxu0 0.0
      %1233 = vmatpush1.msra.mxu0 0.0
      %1234 = vmatprep.subr.mxu0 0.0
      %1235 = vmatpush1.msra.mxu0 0.0
      %1236 = vmatprep.subr.mxu0 0.0
      %1237 = vmatpush1.msra.mxu0 0.0
      %1238 = vmatprep.subr.mxu0 0.0
      %1239 = vmatpush1.msra.mxu0 0.0
      %1240 = vmatprep.subr.mxu0 0.0
      %1241 = vmatpush1.msra.mxu0 0.0
      %1242 = vmatprep.subr.mxu0 0.0
      %1243 = vmatpush1.msra.mxu0 0.0
      %1244 = vmatprep.subr.mxu0 0.0
      %1245 = vmatpush1.msra.mxu0 0.0
      %1246 = vmatprep.subr.mxu0 0.0
      %1247 = vmatpush1.msra.mxu0 0.0
      %1248 = vmatprep.subr.mxu0 0.0
      %1249 = vmatpush1.msra.mxu0 0.0
      %1250 = vmatprep.subr.mxu0 %v1216
      %1251 = vmatpush1.msra.mxu0 %v1214
      %1252 = vmatprep.subr.mxu0 0.0
      %1253 = vmatpush2.msra.mxu0 0.0
      %1254 = vmatprep.subr.mxu0 0.0
      %1255 = vmatpush2.msra.mxu0 0.0
      %1256 = vmatprep.subr.mxu0 0.0
      %1257 = vmatpush2.msra.mxu0 0.0
      %1258 = vmatprep.subr.mxu0 0.0
      %1259 = vmatpush2.msra.mxu0 0.0
      %1260 = vmatprep.subr.mxu0 0.0
      %1261 = vmatpush2.msra.mxu0 0.0
      %1262 = vmatprep.subr.mxu0 0.0
      %1263 = vmatpush2.msra.mxu0 0.0
      %1264 = vmatprep.subr.mxu0 0.0
      %1265 = vmatpush2.msra.mxu0 0.0
      %1266 = vmatprep.subr.mxu0 0.0
      %1267 = vmatpush2.msra.mxu0 0.0
      %1268 = vmatprep.subr.mxu0 0.0
      %1269 = vmatpush2.msra.mxu0 0.0
      %1270 = vmatprep.subr.mxu0 0.0
      %1271 = vmatpush2.msra.mxu0 0.0
      %1272 = vmatprep.subr.mxu0 0.0
      %1273 = vmatpush2.msra.mxu0 0.0
      %1274 = vmatprep.subr.mxu0 0.0
      %1275 = vmatpush2.msra.mxu0 0.0
      %1276 = vmatprep.subr.mxu0 0.0
      %1277 = vmatpush2.msra.mxu0 0.0
      %1278 = vmatprep.subr.mxu0 0.0
      %1279 = vmatpush2.msra.mxu0 0.0
      %1280 = vmatprep.subr.mxu0 0.0
      %1281 = vmatpush2.msra.mxu0 0.0
      %1282 = vmatprep.subr.mxu0 0.0
      %1283 = vmatpush2.msra.mxu0 0.0
      %1284 = vmatprep.mubr.f32.mxu0 0.0
      %1285 = vmatmul.mubr.f32.gmra.mxu0 %v1212
      %v1286 = vpop.f32.mrf.mxu0
      %v1287 = vadd.f32 0.0, %v1286
      %v1288 = vpop.f32.mrf.mxu0
      %v1289 = vadd.f32 0.0, %v1288
      %1290 = vdwg.mxu0
      %1291 = vmatprep.subr.mxu0 0.0
      %1292 = vmatpush1.msra.mxu0 0.0
      %1293 = vmatprep.subr.mxu0 0.0
      %1294 = vmatpush1.msra.mxu0 0.0
      %1295 = vmatprep.subr.mxu0 0.0
      %1296 = vmatpush1.msra.mxu0 0.0
      %1297 = vmatprep.subr.mxu0 0.0
      %1298 = vmatpush1.msra.mxu0 0.0
      %1299 = vmatprep.subr.mxu0 0.0
      %1300 = vmatpush1.msra.mxu0 0.0
      %1301 = vmatprep.subr.mxu0 0.0
      %1302 = vmatpush1.msra.mxu0 0.0
      %1303 = vmatprep.subr.mxu0 0.0
      %1304 = vmatpush1.msra.mxu0 0.0
      %1305 = vmatprep.subr.mxu0 0.0
      %1306 = vmatpush1.msra.mxu0 0.0
      %1307 = vmatprep.subr.mxu0 0.0
      %1308 = vmatpush1.msra.mxu0 0.0
      %1309 = vmatprep.subr.mxu0 0.0
      %1310 = vmatpush1.msra.mxu0 0.0
      %1311 = vmatprep.subr.mxu0 0.0
      %1312 = vmatpush1.msra.mxu0 0.0
      %1313 = vmatprep.subr.mxu0 0.0
      %1314 = vmatpush1.msra.mxu0 0.0
      %1315 = vmatprep.subr.mxu0 0.0
      %1316 = vmatpush1.msra.mxu0 0.0
      %1317 = vmatprep.subr.mxu0 0.0
      %1318 = vmatpush1.msra.mxu0 0.0
      %1319 = vmatprep.subr.mxu0 0.0
      %1320 = vmatpush1.msra.mxu0 0.0
      %1321 = vmatprep.subr.mxu0 0.0
      %1322 = vmatpush1.msra.mxu0 %v1218
      %1323 = vmatprep.subr.mxu0 0.0
      %1324 = vmatpush2.msra.mxu0 0.0
      %1325 = vmatprep.subr.mxu0 0.0
      %1326 = vmatpush2.msra.mxu0 0.0
      %1327 = vmatprep.subr.mxu0 0.0
      %1328 = vmatpush2.msra.mxu0 0.0
      %1329 = vmatprep.subr.mxu0 0.0
      %1330 = vmatpush2.msra.mxu0 0.0
      %1331 = vmatprep.subr.mxu0 0.0
      %1332 = vmatpush2.msra.mxu0 0.0
      %1333 = vmatprep.subr.mxu0 0.0
      %1334 = vmatpush2.msra.mxu0 0.0
      %1335 = vmatprep.subr.mxu0 0.0
      %1336 = vmatpush2.msra.mxu0 0.0
      %1337 = vmatprep.subr.mxu0 0.0
      %1338 = vmatpush2.msra.mxu0 0.0
      %1339 = vmatprep.subr.mxu0 0.0
      %1340 = vmatpush2.msra.mxu0 0.0
      %1341 = vmatprep.subr.mxu0 0.0
      %1342 = vmatpush2.msra.mxu0 0.0
      %1343 = vmatprep.subr.mxu0 0.0
      %1344 = vmatpush2.msra.mxu0 0.0
      %1345 = vmatprep.subr.mxu0 0.0
      %1346 = vmatpush2.msra.mxu0 0.0
      %1347 = vmatprep.subr.mxu0 0.0
      %1348 = vmatpush2.msra.mxu0 0.0
      %1349 = vmatprep.subr.mxu0 0.0
      %1350 = vmatpush2.msra.mxu0 0.0
      %1351 = vmatprep.subr.mxu0 0.0
      %1352 = vmatpush2.msra.mxu0 0.0
      %1353 = vmatprep.subr.mxu0 0.0
      %1354 = vmatpush2.msra.mxu0 0.0
      %1355 = vmatprep.mubr.f32.mxu0 0.0
      %1356 = vmatmul.mubr.f32.gmra.mxu0 %v1212
      %v1357 = vpop.f32.mrf.mxu0
      %v1358 = vadd.f32 0.0, %v1357
      %v1359 = vpop.f32.mrf.mxu0
      %1360 = vdwg.mxu0
      %v1361 = vadd.f32 %v1188, %v1287
      %v1362 = vadd.f32 %v1189, %v1289
      %v1363 = vadd.f32 %v1190, %v1358
      %v1364 = vld [vmem:[%s165] sm:$0xff]
      %v1365 = vld [vmem:[%s165 + $0x8] sm:$0xff]
      %s1366 = scalar_lea.vmem %s1, 56
      %v1367 = vld [vmem:[%s1366] sm:$0xff]
      %v1370 = vcombine.high %v1364, %v1364
      %v1371 = vcombine.high %v1365, %v1365
      %1372 = vrot.lane.b32.xlu0 %v1364, 91
      %v1373 = vpop.permute.xlu0 %1372
      %1374 = vrot.lane.b32.xlu0 %v1370, 91
      %v1375 = vpop.permute.xlu0 %1374
      %1376 = vrot.lane.b32.xlu0 %v1365, 91
      %v1377 = vpop.permute.xlu0 %1376
      %1378 = vrot.lane.b32.xlu0 %v1371, 91
      %v1379 = vpop.permute.xlu0 %1378
      %vm1380 = vcmask 744448
      %v1381 = vsel %vm1380, %v1373, %v1375
      %v1382 = vsel %vm1380, %v1375, %v1377
      %v1383 = vsel %vm1380, %v1377, %v1379
      %v1385 = vsel %vm194, %v1367, 0
      %v1387 = vsel %vm198, %v1381, 0
      %v1389 = vsel %vm198, %v1382, 0
      %v1391 = vsel %vm198, %v1383, 0
      %1393 = vmatprep.subr.mxu0 0.0
      %1394 = vmatpush1.msra.mxu0 0.0
      %1395 = vmatprep.subr.mxu0 0.0
      %1396 = vmatpush1.msra.mxu0 0.0
      %1397 = vmatprep.subr.mxu0 0.0
      %1398 = vmatpush1.msra.mxu0 0.0
      %1399 = vmatprep.subr.mxu0 0.0
      %1400 = vmatpush1.msra.mxu0 0.0
      %1401 = vmatprep.subr.mxu0 0.0
      %1402 = vmatpush1.msra.mxu0 0.0
      %1403 = vmatprep.subr.mxu0 0.0
      %1404 = vmatpush1.msra.mxu0 0.0
      %1405 = vmatprep.subr.mxu0 0.0
      %1406 = vmatpush1.msra.mxu0 0.0
      %1407 = vmatprep.subr.mxu0 0.0
      %1408 = vmatpush1.msra.mxu0 0.0
      %1409 = vmatprep.subr.mxu0 0.0
      %1410 = vmatpush1.msra.mxu0 0.0
      %1411 = vmatprep.subr.mxu0 0.0
      %1412 = vmatpush1.msra.mxu0 0.0
      %1413 = vmatprep.subr.mxu0 0.0
      %1414 = vmatpush1.msra.mxu0 0.0
      %1415 = vmatprep.subr.mxu0 0.0
      %1416 = vmatpush1.msra.mxu0 0.0
      %1417 = vmatprep.subr.mxu0 0.0
      %1418 = vmatpush1.msra.mxu0 0.0
      %1419 = vmatprep.subr.mxu0 0.0
      %1420 = vmatpush1.msra.mxu0 0.0
      %1421 = vmatprep.subr.mxu0 0.0
      %1422 = vmatpush1.msra.mxu0 0.0
      %1423 = vmatprep.subr.mxu0 %v1389
      %1424 = vmatpush1.msra.mxu0 %v1387
      %1425 = vmatprep.subr.mxu0 0.0
      %1426 = vmatpush2.msra.mxu0 0.0
      %1427 = vmatprep.subr.mxu0 0.0
      %1428 = vmatpush2.msra.mxu0 0.0
      %1429 = vmatprep.subr.mxu0 0.0
      %1430 = vmatpush2.msra.mxu0 0.0
      %1431 = vmatprep.subr.mxu0 0.0
      %1432 = vmatpush2.msra.mxu0 0.0
      %1433 = vmatprep.subr.mxu0 0.0
      %1434 = vmatpush2.msra.mxu0 0.0
      %1435 = vmatprep.subr.mxu0 0.0
      %1436 = vmatpush2.msra.mxu0 0.0
      %1437 = vmatprep.subr.mxu0 0.0
      %1438 = vmatpush2.msra.mxu0 0.0
      %1439 = vmatprep.subr.mxu0 0.0
      %1440 = vmatpush2.msra.mxu0 0.0
      %1441 = vmatprep.subr.mxu0 0.0
      %1442 = vmatpush2.msra.mxu0 0.0
      %1443 = vmatprep.subr.mxu0 0.0
      %1444 = vmatpush2.msra.mxu0 0.0
      %1445 = vmatprep.subr.mxu0 0.0
      %1446 = vmatpush2.msra.mxu0 0.0
      %1447 = vmatprep.subr.mxu0 0.0
      %1448 = vmatpush2.msra.mxu0 0.0
      %1449 = vmatprep.subr.mxu0 0.0
      %1450 = vmatpush2.msra.mxu0 0.0
      %1451 = vmatprep.subr.mxu0 0.0
      %1452 = vmatpush2.msra.mxu0 0.0
      %1453 = vmatprep.subr.mxu0 0.0
      %1454 = vmatpush2.msra.mxu0 0.0
      %1455 = vmatprep.subr.mxu0 0.0
      %1456 = vmatpush2.msra.mxu0 0.0
      %1457 = vmatprep.mubr.f32.mxu0 0.0
      %1458 = vmatmul.mubr.f32.gmra.mxu0 %v1385
      %v1459 = vpop.f32.mrf.mxu0
      %v1460 = vadd.f32 0.0, %v1459
      %v1461 = vpop.f32.mrf.mxu0
      %v1462 = vadd.f32 0.0, %v1461
      %1463 = vdwg.mxu0
      %1464 = vmatprep.subr.mxu0 0.0
      %1465 = vmatpush1.msra.mxu0 0.0
      %1466 = vmatprep.subr.mxu0 0.0
      %1467 = vmatpush1.msra.mxu0 0.0
      %1468 = vmatprep.subr.mxu0 0.0
      %1469 = vmatpush1.msra.mxu0 0.0
      %1470 = vmatprep.subr.mxu0 0.0
      %1471 = vmatpush1.msra.mxu0 0.0
      %1472 = vmatprep.subr.mxu0 0.0
      %1473 = vmatpush1.msra.mxu0 0.0
      %1474 = vmatprep.subr.mxu0 0.0
      %1475 = vmatpush1.msra.mxu0 0.0
      %1476 = vmatprep.subr.mxu0 0.0
      %1477 = vmatpush1.msra.mxu0 0.0
      %1478 = vmatprep.subr.mxu0 0.0
      %1479 = vmatpush1.msra.mxu0 0.0
      %1480 = vmatprep.subr.mxu0 0.0
      %1481 = vmatpush1.msra.mxu0 0.0
      %1482 = vmatprep.subr.mxu0 0.0
      %1483 = vmatpush1.msra.mxu0 0.0
      %1484 = vmatprep.subr.mxu0 0.0
      %1485 = vmatpush1.msra.mxu0 0.0
      %1486 = vmatprep.subr.mxu0 0.0
      %1487 = vmatpush1.msra.mxu0 0.0
      %1488 = vmatprep.subr.mxu0 0.0
      %1489 = vmatpush1.msra.mxu0 0.0
      %1490 = vmatprep.subr.mxu0 0.0
      %1491 = vmatpush1.msra.mxu0 0.0
      %1492 = vmatprep.subr.mxu0 0.0
      %1493 = vmatpush1.msra.mxu0 0.0
      %1494 = vmatprep.subr.mxu0 0.0
      %1495 = vmatpush1.msra.mxu0 %v1391
      %1496 = vmatprep.subr.mxu0 0.0
      %1497 = vmatpush2.msra.mxu0 0.0
      %1498 = vmatprep.subr.mxu0 0.0
      %1499 = vmatpush2.msra.mxu0 0.0
      %1500 = vmatprep.subr.mxu0 0.0
      %1501 = vmatpush2.msra.mxu0 0.0
      %1502 = vmatprep.subr.mxu0 0.0
      %1503 = vmatpush2.msra.mxu0 0.0
      %1504 = vmatprep.subr.mxu0 0.0
      %1505 = vmatpush2.msra.mxu0 0.0
      %1506 = vmatprep.subr.mxu0 0.0
      %1507 = vmatpush2.msra.mxu0 0.0
      %1508 = vmatprep.subr.mxu0 0.0
      %1509 = vmatpush2.msra.mxu0 0.0
      %1510 = vmatprep.subr.mxu0 0.0
      %1511 = vmatpush2.msra.mxu0 0.0
      %1512 = vmatprep.subr.mxu0 0.0
      %1513 = vmatpush2.msra.mxu0 0.0
      %1514 = vmatprep.subr.mxu0 0.0
      %1515 = vmatpush2.msra.mxu0 0.0
      %1516 = vmatprep.subr.mxu0 0.0
      %1517 = vmatpush2.msra.mxu0 0.0
      %1518 = vmatprep.subr.mxu0 0.0
      %1519 = vmatpush2.msra.mxu0 0.0
      %1520 = vmatprep.subr.mxu0 0.0
      %1521 = vmatpush2.msra.mxu0 0.0
      %1522 = vmatprep.subr.mxu0 0.0
      %1523 = vmatpush2.msra.mxu0 0.0
      %1524 = vmatprep.subr.mxu0 0.0
      %1525 = vmatpush2.msra.mxu0 0.0
      %1526 = vmatprep.subr.mxu0 0.0
      %1527 = vmatpush2.msra.mxu0 0.0
      %1528 = vmatprep.mubr.f32.mxu0 0.0
      %1529 = vmatmul.mubr.f32.gmra.mxu0 %v1385
      %v1530 = vpop.f32.mrf.mxu0
      %v1531 = vadd.f32 0.0, %v1530
      %v1532 = vpop.f32.mrf.mxu0
      %1533 = vdwg.mxu0
      %v1534 = vadd.f32 %v1361, %v1460
      %v1535 = vadd.f32 %v1362, %v1462
      %v1536 = vadd.f32 %v1363, %v1531
      %v1537 = vld [vmem:[%s165] sm:$0xff]
      %v1538 = vld [vmem:[%s165 + $0x8] sm:$0xff]
      %s1539 = scalar_lea.vmem %s1, 64
      %v1540 = vld [vmem:[%s1539] sm:$0xff]
      %v1543 = vcombine.high %v1537, %v1537
      %v1544 = vcombine.high %v1538, %v1538
      %1545 = vrot.lane.b32.xlu0 %v1537, 90
      %v1546 = vpop.permute.xlu0 %1545
      %1547 = vrot.lane.b32.xlu0 %v1543, 90
      %v1548 = vpop.permute.xlu0 %1547
      %1549 = vrot.lane.b32.xlu0 %v1538, 90
      %v1550 = vpop.permute.xlu0 %1549
      %1551 = vrot.lane.b32.xlu0 %v1544, 90
      %v1552 = vpop.permute.xlu0 %1551
      %vm1553 = vcmask 736256
      %v1554 = vsel %vm1553, %v1546, %v1548
      %v1555 = vsel %vm1553, %v1548, %v1550
      %v1556 = vsel %vm1553, %v1550, %v1552
      %v1558 = vsel %vm194, %v1540, 0
      %v1560 = vsel %vm198, %v1554, 0
      %v1562 = vsel %vm198, %v1555, 0
      %v1564 = vsel %vm198, %v1556, 0
      %1566 = vmatprep.subr.mxu0 0.0
      %1567 = vmatpush1.msra.mxu0 0.0
      %1568 = vmatprep.subr.mxu0 0.0
      %1569 = vmatpush1.msra.mxu0 0.0
      %1570 = vmatprep.subr.mxu0 0.0
      %1571 = vmatpush1.msra.mxu0 0.0
      %1572 = vmatprep.subr.mxu0 0.0
      %1573 = vmatpush1.msra.mxu0 0.0
      %1574 = vmatprep.subr.mxu0 0.0
      %1575 = vmatpush1.msra.mxu0 0.0
      %1576 = vmatprep.subr.mxu0 0.0
      %1577 = vmatpush1.msra.mxu0 0.0
      %1578 = vmatprep.subr.mxu0 0.0
      %1579 = vmatpush1.msra.mxu0 0.0
      %1580 = vmatprep.subr.mxu0 0.0
      %1581 = vmatpush1.msra.mxu0 0.0
      %1582 = vmatprep.subr.mxu0 0.0
      %1583 = vmatpush1.msra.mxu0 0.0
      %1584 = vmatprep.subr.mxu0 0.0
      %1585 = vmatpush1.msra.mxu0 0.0
      %1586 = vmatprep.subr.mxu0 0.0
      %1587 = vmatpush1.msra.mxu0 0.0
      %1588 = vmatprep.subr.mxu0 0.0
      %1589 = vmatpush1.msra.mxu0 0.0
      %1590 = vmatprep.subr.mxu0 0.0
      %1591 = vmatpush1.msra.mxu0 0.0
      %1592 = vmatprep.subr.mxu0 0.0
      %1593 = vmatpush1.msra.mxu0 0.0
      %1594 = vmatprep.subr.mxu0 0.0
      %1595 = vmatpush1.msra.mxu0 0.0
      %1596 = vmatprep.subr.mxu0 %v1562
      %1597 = vmatpush1.msra.mxu0 %v1560
      %1598 = vmatprep.subr.mxu0 0.0
      %1599 = vmatpush2.msra.mxu0 0.0
      %1600 = vmatprep.subr.mxu0 0.0
      %1601 = vmatpush2.msra.mxu0 0.0
      %1602 = vmatprep.subr.mxu0 0.0
      %1603 = vmatpush2.msra.mxu0 0.0
      %1604 = vmatprep.subr.mxu0 0.0
      %1605 = vmatpush2.msra.mxu0 0.0
      %1606 = vmatprep.subr.mxu0 0.0
      %1607 = vmatpush2.msra.mxu0 0.0
      %1608 = vmatprep.subr.mxu0 0.0
      %1609 = vmatpush2.msra.mxu0 0.0
      %1610 = vmatprep.subr.mxu0 0.0
      %1611 = vmatpush2.msra.mxu0 0.0
      %1612 = vmatprep.subr.mxu0 0.0
      %1613 = vmatpush2.msra.mxu0 0.0
      %1614 = vmatprep.subr.mxu0 0.0
      %1615 = vmatpush2.msra.mxu0 0.0
      %1616 = vmatprep.subr.mxu0 0.0
      %1617 = vmatpush2.msra.mxu0 0.0
      %1618 = vmatprep.subr.mxu0 0.0
      %1619 = vmatpush2.msra.mxu0 0.0
      %1620 = vmatprep.subr.mxu0 0.0
      %1621 = vmatpush2.msra.mxu0 0.0
      %1622 = vmatprep.subr.mxu0 0.0
      %1623 = vmatpush2.msra.mxu0 0.0
      %1624 = vmatprep.subr.mxu0 0.0
      %1625 = vmatpush2.msra.mxu0 0.0
      %1626 = vmatprep.subr.mxu0 0.0
      %1627 = vmatpush2.msra.mxu0 0.0
      %1628 = vmatprep.subr.mxu0 0.0
      %1629 = vmatpush2.msra.mxu0 0.0
      %1630 = vmatprep.mubr.f32.mxu0 0.0
      %1631 = vmatmul.mubr.f32.gmra.mxu0 %v1558
      %v1632 = vpop.f32.mrf.mxu0
      %v1633 = vadd.f32 0.0, %v1632
      %v1634 = vpop.f32.mrf.mxu0
      %v1635 = vadd.f32 0.0, %v1634
      %1636 = vdwg.mxu0
      %1637 = vmatprep.subr.mxu0 0.0
      %1638 = vmatpush1.msra.mxu0 0.0
      %1639 = vmatprep.subr.mxu0 0.0
      %1640 = vmatpush1.msra.mxu0 0.0
      %1641 = vmatprep.subr.mxu0 0.0
      %1642 = vmatpush1.msra.mxu0 0.0
      %1643 = vmatprep.subr.mxu0 0.0
      %1644 = vmatpush1.msra.mxu0 0.0
      %1645 = vmatprep.subr.mxu0 0.0
      %1646 = vmatpush1.msra.mxu0 0.0
      %1647 = vmatprep.subr.mxu0 0.0
      %1648 = vmatpush1.msra.mxu0 0.0
      %1649 = vmatprep.subr.mxu0 0.0
      %1650 = vmatpush1.msra.mxu0 0.0
      %1651 = vmatprep.subr.mxu0 0.0
      %1652 = vmatpush1.msra.mxu0 0.0
      %1653 = vmatprep.subr.mxu0 0.0
      %1654 = vmatpush1.msra.mxu0 0.0
      %1655 = vmatprep.subr.mxu0 0.0
      %1656 = vmatpush1.msra.mxu0 0.0
      %1657 = vmatprep.subr.mxu0 0.0
      %1658 = vmatpush1.msra.mxu0 0.0
      %1659 = vmatprep.subr.mxu0 0.0
      %1660 = vmatpush1.msra.mxu0 0.0
      %1661 = vmatprep.subr.mxu0 0.0
      %1662 = vmatpush1.msra.mxu0 0.0
      %1663 = vmatprep.subr.mxu0 0.0
      %1664 = vmatpush1.msra.mxu0 0.0
      %1665 = vmatprep.subr.mxu0 0.0
      %1666 = vmatpush1.msra.mxu0 0.0
      %1667 = vmatprep.subr.mxu0 0.0
      %1668 = vmatpush1.msra.mxu0 %v1564
      %1669 = vmatprep.subr.mxu0 0.0
      %1670 = vmatpush2.msra.mxu0 0.0
      %1671 = vmatprep.subr.mxu0 0.0
      %1672 = vmatpush2.msra.mxu0 0.0
      %1673 = vmatprep.subr.mxu0 0.0
      %1674 = vmatpush2.msra.mxu0 0.0
      %1675 = vmatprep.subr.mxu0 0.0
      %1676 = vmatpush2.msra.mxu0 0.0
      %1677 = vmatprep.subr.mxu0 0.0
      %1678 = vmatpush2.msra.mxu0 0.0
      %1679 = vmatprep.subr.mxu0 0.0
      %1680 = vmatpush2.msra.mxu0 0.0
      %1681 = vmatprep.subr.mxu0 0.0
      %1682 = vmatpush2.msra.mxu0 0.0
      %1683 = vmatprep.subr.mxu0 0.0
      %1684 = vmatpush2.msra.mxu0 0.0
      %1685 = vmatprep.subr.mxu0 0.0
      %1686 = vmatpush2.msra.mxu0 0.0
      %1687 = vmatprep.subr.mxu0 0.0
      %1688 = vmatpush2.msra.mxu0 0.0
      %1689 = vmatprep.subr.mxu0 0.0
      %1690 = vmatpush2.msra.mxu0 0.0
      %1691 = vmatprep.subr.mxu0 0.0
      %1692 = vmatpush2.msra.mxu0 0.0
      %1693 = vmatprep.subr.mxu0 0.0
      %1694 = vmatpush2.msra.mxu0 0.0
      %1695 = vmatprep.subr.mxu0 0.0
      %1696 = vmatpush2.msra.mxu0 0.0
      %1697 = vmatprep.subr.mxu0 0.0
      %1698 = vmatpush2.msra.mxu0 0.0
      %1699 = vmatprep.subr.mxu0 0.0
      %1700 = vmatpush2.msra.mxu0 0.0
      %1701 = vmatprep.mubr.f32.mxu0 0.0
      %1702 = vmatmul.mubr.f32.gmra.mxu0 %v1558
      %v1703 = vpop.f32.mrf.mxu0
      %v1704 = vadd.f32 0.0, %v1703
      %v1705 = vpop.f32.mrf.mxu0
      %1706 = vdwg.mxu0
      %v1707 = vadd.f32 %v1534, %v1633
      %v1708 = vadd.f32 %v1535, %v1635
      %v1709 = vadd.f32 %v1536, %v1704
      %v1710 = vld [vmem:[%s2] sm:$0xff]
      %1712 = vset.pattern.permute.xlu0 0
      %1713 = vperm.xlu0 %1712, %v1710
      %v1714 = vpop.permute.xlu0 %1713
      %v1716 = vadd.f32 %v1707, %v1714
      %v1717 = vadd.f32 %v1708, %v1714
      %v1718 = vadd.f32 %v1709, %v1714
      %v1719 = vmax.f32 %v1716, 0.0
      %v1720 = vmax.f32 %v1717, 0.0
      %v1721 = vmax.f32 %v1718, 0.0
      %1722 = vst [vmem:[%s170] sm:$0xff] %v1719
      %1723 = vst [vmem:[%s170 + $0x8] sm:$0xff] %v1720
      %1724 = vst [vmem:[%s170 + $0x10] sm:$0xff] %v1721
      %p1725 = scmp.lt.s32.totalorder %s14, 1
      %s1726 = scalar_select %p1725, %s14, 1
      %s1727 = smul.addr %s1726, 3
      %s1728 = smul.addr %s1727, 8
      %s1729 = scalar_lea.vmem %s3, %s1728
      // Predicated region
      $region33: #{conv_block.1} parent=31 // pred_check
        %p1730 = pneg %p100
      $region34: #{conv_block.1} parent=31 // pred_check_branch
        %1732 = sbr.rel (%p1730) target = $region36
      $region35: #{conv_block.1} parent=31 // pred_region
        _
      $region36: #{conv_block.1} parent=31 // pred_fallthru
        _
    $region32: #{conv_block.1} parent=5 // pred_fallthru
      _
    %p1733 = scmp.le.s32.totalorder 2, %s9
    // Predicated region
    $region37: #{conv_block.1} parent=5 // pred_check
      %p1734 = pneg %p1733
    $region38: #{conv_block.1} parent=5 // pred_check_branch
      %1736 = sbr.rel (%p1734) target = $region40
    $region39: #{conv_block.1} parent=5 // pred_region
      %s1737 = ssub.s32 %s9, 2
      // Predicated region
      $region41: #{conv_block.1} parent=39 // pred_check
        %p1738 = pneg %p106
      $region42: #{conv_block.1} parent=39 // pred_check_branch
        %1740 = sbr.rel (%p1738) target = $region44
      $region43: #{conv_block.1} parent=39 // pred_region
        %p1741 = scmp.lt.s32.totalorder %s15, 1
        %s1742 = scalar_select %p1741, %s15, 1
        %s1743 = smul.addr %s1742, 3
        %s1744 = smul.addr %s1743, 8
        %s1745 = scalar_lea.vmem %s3, %s1744
      $region44: #{conv_block.1} parent=39 // pred_fallthru
        _
    $region40: #{conv_block.1} parent=5 // pred_fallthru
      _
  $region6: #{conv_block.1} parent=0 // loop_footer
    %s13 = sadd.s32 1, %s9
  $region7: #{conv_block.1} parent=0 // loop_footer_branch
    %8 = sbr.rel target = $region3
  $region8: #{conv_block.1} parent=0 // loop_exit
    _

</llo_original>
